<compile_context>
chip_gen: v7x
topology: tpu7x:2x2x1
jax: 0.10.0
libtpu: 0.0.40
codegen_flags: <defaults>
</compile_context>

<pallas_src>
import functools

import jax
import jax.numpy as jnp
from jax.experimental import pallas as pl
from jax.experimental.pallas import tpu as pltpu


# ----------------------------- Pallas kernels ------------------------------ #

def _matmul_bias_act_kernel(w_ref, x_ref, b_ref, o_ref, *, act):
    # o = act(W @ X + b) ; W:(N,K) bf16, X:(K,TM) bf16, b:(N,1) f32, o:(N,TM) f32
    y = jnp.dot(w_ref[...], x_ref[...], preferred_element_type=jnp.float32)
    y = y + b_ref[...]                       # lane-broadcast of per-channel bias
    if act == "relu":
        y = jnp.maximum(y, 0.0)
    elif act == "tanh":
        y = jnp.tanh(y)                      # EUP, f32
    o_ref[...] = y.astype(o_ref.dtype)


def matmul_bias_act(w, x, b, act, *, tile_m=512):
    """act(w @ x + b[:, None]) with a lane-dense (N, M) output.

    w: (N, K) weights, x: (K, M) im2col patches, b: (N,) bias.
    M is the big B*Ho*Wo axis -> lives on lanes; tiled + parallel over grid.
    """
    N, K = w.shape
    _, M = x.shape
    b2 = b.reshape(N, 1).astype(jnp.float32)
    wm = w.astype(jnp.bfloat16)              # bf16 MXU operands, f32 accumulate
    xm = x.astype(jnp.bfloat16)

    block_m = M if M <= tile_m else tile_m   # tile_m is a multiple of 128
    grid = (pl.cdiv(M, block_m),)

    return pl.pallas_call(
        functools.partial(_matmul_bias_act_kernel, act=act),
        out_shape=jax.ShapeDtypeStruct((N, M), jnp.float32),
        grid=grid,
        in_specs=[
            pl.BlockSpec((N, K), lambda i: (0, 0)),
            pl.BlockSpec((K, block_m), lambda i: (0, i)),
            pl.BlockSpec((N, 1), lambda i: (0, 0)),
        ],
        out_specs=pl.BlockSpec((N, block_m), lambda i: (0, i)),
        compiler_params=pltpu.CompilerParams(
            dimension_semantics=("parallel",)),
    )(wm, xm, b2)


def _max_reduce_kernel(x_ref, o_ref, *, kk):
    # Reduce over the leading (window) axis with pairwise VPU maximums;
    # input (kk, TM) and output (1, TM) are both lane-dense.
    acc = x_ref[0:1, :]
    for i in range(1, kk):
        acc = jnp.maximum(acc, x_ref[i:i + 1, :])
    o_ref[...] = acc


def _max_over_windows(wins, *, tile_m=2048):
    KK, M = wins.shape
    block_m = M if M <= tile_m else tile_m
    grid = (pl.cdiv(M, block_m),)
    return pl.pallas_call(
        functools.partial(_max_reduce_kernel, kk=KK),
        out_shape=jax.ShapeDtypeStruct((1, M), jnp.float32),
        grid=grid,
        in_specs=[pl.BlockSpec((KK, block_m), lambda i: (0, i))],
        out_specs=pl.BlockSpec((1, block_m), lambda i: (0, i)),
        compiler_params=pltpu.CompilerParams(
            dimension_semantics=("parallel",)),
    )(wins.astype(jnp.float32))


# --------------------------- conv / pool wrappers --------------------------- #
# Internal activation layout everywhere below: (C, B, H, W).

def _im2col(x, kh, kw, stride, padding):
    # (C, B, H, W) -> cols (C*kh*kw, B*Ho*Wo); no transposes required.
    C, B, H, W = x.shape
    xp = jnp.pad(x, ((0, 0), (0, 0), (padding, padding), (padding, padding)))
    Ho = (H + 2 * padding - kh) // stride + 1
    Wo = (W + 2 * padding - kw) // stride + 1
    cols = []
    for i in range(kh):
        for j in range(kw):
            cols.append(xp[:, :, i:i + stride * Ho:stride, j:j + stride * Wo:stride])
    cols = jnp.stack(cols, axis=1)                      # (C, kh*kw, B, Ho, Wo)
    return cols.reshape(C * kh * kw, B * Ho * Wo), Ho, Wo


def conv2d(x, w, b, stride, padding, act):
    # x: (C, B, H, W) internal layout; w: (Cout, Cin, kh, kw) (PyTorch Conv2d).
    O, C, kh, kw = w.shape
    B = x.shape[1]
    cols, Ho, Wo = _im2col(x, kh, kw, stride, padding)  # (C*kh*kw, B*Ho*Wo)
    wm = w.reshape(O, C * kh * kw)                      # (Cout, C*kh*kw)
    y = matmul_bias_act(wm, cols, b, act)               # (Cout, B*Ho*Wo)  <- Pallas
    return y.reshape(O, B, Ho, Wo)                      # already internal layout


def conv_transpose2d(x, w, b, stride, padding, act):
    # w: (Cin, Cout, kh, kw)  (PyTorch ConvTranspose2d layout)
    Cin, Cout, kh, kw = w.shape
    C, B, H, W = x.shape
    # Fractionally-strided conv: zero-dilate input, pad by k-1-p, stride-1 conv.
    # (The dilated tensor is mostly zeros; acceptable at these sizes.)
    if stride > 1:
        xd = jnp.zeros((C, B, (H - 1) * stride + 1, (W - 1) * stride + 1), x.dtype)
        xd = xd.at[:, :, ::stride, ::stride].set(x)
    else:
        xd = x
    w_conv = jnp.flip(w, axis=(2, 3)).transpose(1, 0, 2, 3)   # (Cout, Cin, kh, kw)
    return conv2d(xd, w_conv, b, stride=1, padding=kh - 1 - padding, act=act)


def maxpool2d(x, k, stride):
    # x: (C, B, H, W). Window elements stacked on the leading axis; the Pallas
    # kernel reduces over them with pairwise maximums (lane-dense in and out).
    C, B, H, W = x.shape
    Ho = (H - k) // stride + 1
    Wo = (W - k) // stride + 1
    wins = []
    for i in range(k):
        for j in range(k):
            wins.append(x[:, :, i:i + stride * Ho:stride, j:j + stride * Wo:stride])
    wins = jnp.stack(wins, axis=0).reshape(k * k, C * B * Ho * Wo)
    out = _max_over_windows(wins)                       # (1, C*B*Ho*Wo) <- Pallas
    return out.reshape(C, B, Ho, Wo)


# ------------------------------- model setup -------------------------------- #

def init_params(key):
    def u(k, shape, fan_in):
        bound = 1.0 / jnp.sqrt(float(fan_in))
        return jax.random.uniform(k, shape, jnp.float32, -bound, bound)

    ks = jax.random.split(key, 10)
    return {
        # encoder: Conv2d(1,16,3,s3,p1), Conv2d(16,8,3,s2,p1)
        "e1_w": u(ks[0], (16, 1, 3, 3), 1 * 9),  "e1_b": u(ks[1], (16,), 1 * 9),
        "e2_w": u(ks[2], (8, 16, 3, 3), 16 * 9), "e2_b": u(ks[3], (8,), 16 * 9),
        # decoder: ConvT(8,16,3,s2), ConvT(16,8,5,s3,p1), ConvT(8,1,2,s2,p1)
        "d1_w": u(ks[4], (8, 16, 3, 3), 16 * 9), "d1_b": u(ks[5], (16,), 16 * 9),
        "d2_w": u(ks[6], (16, 8, 5, 5), 8 * 25), "d2_b": u(ks[7], (8,), 8 * 25),
        "d3_w": u(ks[8], (8, 1, 2, 2), 1 * 4),   "d3_b": u(ks[9], (1,), 1 * 4),
    }


def conv_autoencoder_forward(params, x):
    # x: (B, C, H, W) NCHW at the boundary; internal layout is (C, B, H, W).
    h = x.transpose(1, 0, 2, 3)
    # encoder: Conv -> ReLU -> MaxPool(2,2) -> Conv -> ReLU -> MaxPool(2,1)
    h = conv2d(h, params["e1_w"], params["e1_b"], stride=3, padding=1, act="relu")
    h = maxpool2d(h, 2, 2)
    h = conv2d(h, params["e2_w"], params["e2_b"], stride=2, padding=1, act="relu")
    enc = maxpool2d(h, 2, 1)                                     # (8, B, 2, 2)
    # decoder: ConvT -> ReLU -> ConvT -> ReLU -> ConvT -> Tanh
    d = conv_transpose2d(enc, params["d1_w"], params["d1_b"],
                         stride=2, padding=0, act="relu")        # (16, B, 5, 5)
    d = conv_transpose2d(d, params["d2_w"], params["d2_b"],
                         stride=3, padding=1, act="relu")        # (8, B, 15, 15)
    dec = conv_transpose2d(d, params["d3_w"], params["d3_b"],
                           stride=2, padding=1, act="tanh")      # (1, B, 28, 28)
    # convert back to NCHW only at the model boundary
    return enc.transpose(1, 0, 2, 3), dec.transpose(1, 0, 2, 3)


if __name__ == "__main__":
    key = jax.random.PRNGKey(0)
    kp, kx = jax.random.split(key)
    params = init_params(kp)
    x = jax.random.normal(kx, (2, 1, 28, 28), jnp.float32)   # NCHW, MNIST-sized
    encode, decode = jax.jit(conv_autoencoder_forward)(params, x)
    jax.block_until_ready((encode, decode))
    assert encode.shape == (2, 8, 2, 2), encode.shape
    assert decode.shape == (2, 1, 28, 28), decode.shape
    print("KERNEL_OK")
</pallas_src>

<mosaic_0001>
module attributes {stable_mosaic.version = 11 : i64} {
  func.func @_matmul_bias_act_kernel(%arg0: i32, %arg1: memref<16x9xbf16, #tpu.memory_space<vmem>>, %arg2: memref<9x200xbf16, #tpu.memory_space<vmem>>, %arg3: memref<16x1xf32, #tpu.memory_space<vmem>>, %arg4: memref<16x200xf32, #tpu.memory_space<vmem>>) attributes {dimension_semantics = [#tpu.dimension_semantics<parallel>], iteration_bounds = array<i64: 1>, scalar_prefetch = 0 : i64, scratch_operands = 0 : i64, tpu.core_type = #tpu.core_type<tc>, window_params = [{pipeline_mode = #tpu.pipeline_mode<synchronous>, transform_indices = @transform_0, window_bounds = array<i64: 16, 9>}, {transform_indices = @transform_1, window_bounds = array<i64: 9, 200>}, {pipeline_mode = #tpu.pipeline_mode<synchronous>, transform_indices = @transform_2, window_bounds = array<i64: 16, 1>}, {transform_indices = @transform_3, window_bounds = array<i64: 16, 200>}]} {
    %c0 = arith.constant 0 : index
    %c0_0 = arith.constant 0 : index
    %0 = vector.load %arg1[%c0, %c0_0] : memref<16x9xbf16, #tpu.memory_space<vmem>>, vector<16x9xbf16>
    %c0_1 = arith.constant 0 : index
    %c0_2 = arith.constant 0 : index
    %1 = vector.load %arg2[%c0_1, %c0_2] : memref<9x200xbf16, #tpu.memory_space<vmem>>, vector<9x200xbf16>
    %cst = arith.constant dense<0.000000e+00> : vector<16x200xf32>
    %2 = tpu.matmul %0, %1, %cst {dimension_numbers = #tpu.dot_dimension_numbers<[1], [0], [0], [1], [0, 0, 1, 1], [], []>} : vector<16x9xbf16>, vector<9x200xbf16>, vector<16x200xf32> -> vector<16x200xf32>
    %c0_3 = arith.constant 0 : index
    %c0_4 = arith.constant 0 : index
    %3 = vector.load %arg3[%c0_3, %c0_4] : memref<16x1xf32, #tpu.memory_space<vmem>>, vector<16x1xf32>
    %4 = vector.broadcast %3 : vector<16x1xf32> to vector<16x200xf32>
    %5 = arith.addf %2, %4 : vector<16x200xf32>
    %cst_5 = arith.constant 0.000000e+00 : f32
    %6 = vector.broadcast %cst_5 : f32 to vector<16x200xf32>
    %7 = arith.maximumf %5, %6 : vector<16x200xf32>
    %c0_6 = arith.constant 0 : index
    %c0_7 = arith.constant 0 : index
    %8 = vector.load %arg4[%c0_6, %c0_7] : memref<16x200xf32, #tpu.memory_space<vmem>>, vector<16x200xf32>
    tpu.vector_store %arg4[%c0_6, %c0_7], %7 {strides = array<i32>} : memref<16x200xf32, #tpu.memory_space<vmem>>, vector<16x200xf32>,
    return
  }
  func.func @transform_0(%arg0: i32) -> (i32, i32) {
    %c0_i32 = arith.constant 0 : i32
    %c0_i32_0 = arith.constant 0 : i32
    %c0_i32_1 = arith.constant 0 : i32
    return %c0_i32, %c0_i32_0 : i32, i32
  }
  func.func @transform_1(%arg0: i32) -> (i32, i32) {
    %c0_i32 = arith.constant 0 : i32
    %c0_i32_0 = arith.constant 0 : i32
    return %c0_i32, %arg0 : i32, i32
  }
  func.func @transform_2(%arg0: i32) -> (i32, i32) {
    %c0_i32 = arith.constant 0 : i32
    %c0_i32_0 = arith.constant 0 : i32
    %c0_i32_1 = arith.constant 0 : i32
    return %c0_i32, %c0_i32_0 : i32, i32
  }
  func.func @transform_3(%arg0: i32) -> (i32, i32) {
    %c0_i32 = arith.constant 0 : i32
    %c0_i32_0 = arith.constant 0 : i32
    return %c0_i32, %arg0 : i32, i32
  }
}

module attributes {stable_mosaic.version = 11 : i64} {
  func.func @_max_reduce_kernel(%arg0: i32, %arg1: memref<4x800xf32, #tpu.memory_space<vmem>>, %arg2: memref<1x800xf32, #tpu.memory_space<vmem>>) attributes {dimension_semantics = [#tpu.dimension_semantics<parallel>], iteration_bounds = array<i64: 1>, scalar_prefetch = 0 : i64, scratch_operands = 0 : i64, tpu.core_type = #tpu.core_type<tc>, window_params = [{transform_indices = @transform_0, window_bounds = array<i64: 4, 800>}, {transform_indices = @transform_1, window_bounds = array<i64: 1, 800>}]} {
    %c0 = arith.constant 0 : index
    %c0_0 = arith.constant 0 : index
    %0 = vector.load %arg1[%c0, %c0_0] : memref<4x800xf32, #tpu.memory_space<vmem>>, vector<1x800xf32>
    %c1 = arith.constant 1 : index
    %c0_1 = arith.constant 0 : index
    %1 = vector.load %arg1[%c1, %c0_1] : memref<4x800xf32, #tpu.memory_space<vmem>>, vector<1x800xf32>
    %2 = arith.maximumf %0, %1 : vector<1x800xf32>
    %c2 = arith.constant 2 : index
    %c0_2 = arith.constant 0 : index
    %3 = vector.load %arg1[%c2, %c0_2] : memref<4x800xf32, #tpu.memory_space<vmem>>, vector<1x800xf32>
    %4 = arith.maximumf %2, %3 : vector<1x800xf32>
    %c3 = arith.constant 3 : index
    %c0_3 = arith.constant 0 : index
    %5 = vector.load %arg1[%c3, %c0_3] : memref<4x800xf32, #tpu.memory_space<vmem>>, vector<1x800xf32>
    %6 = arith.maximumf %4, %5 : vector<1x800xf32>
    %c0_4 = arith.constant 0 : index
    %c0_5 = arith.constant 0 : index
    %7 = vector.load %arg2[%c0_4, %c0_5] : memref<1x800xf32, #tpu.memory_space<vmem>>, vector<1x800xf32>
    tpu.vector_store %arg2[%c0_4, %c0_5], %6 {strides = array<i32>} : memref<1x800xf32, #tpu.memory_space<vmem>>, vector<1x800xf32>,
    return
  }
  func.func @transform_0(%arg0: i32) -> (i32, i32) {
    %c0_i32 = arith.constant 0 : i32
    %c0_i32_0 = arith.constant 0 : i32
    return %c0_i32, %arg0 : i32, i32
  }
  func.func @transform_1(%arg0: i32) -> (i32, i32) {
    %c0_i32 = arith.constant 0 : i32
    %c0_i32_0 = arith.constant 0 : i32
    return %c0_i32, %arg0 : i32, i32
  }
}

module attributes {stable_mosaic.version = 11 : i64} {
  func.func @_matmul_bias_act_kernel(%arg0: i32, %arg1: memref<8x144xbf16, #tpu.memory_space<vmem>>, %arg2: memref<144x18xbf16, #tpu.memory_space<vmem>>, %arg3: memref<8x1xf32, #tpu.memory_space<vmem>>, %arg4: memref<8x18xf32, #tpu.memory_space<vmem>>) attributes {dimension_semantics = [#tpu.dimension_semantics<parallel>], iteration_bounds = array<i64: 1>, scalar_prefetch = 0 : i64, scratch_operands = 0 : i64, tpu.core_type = #tpu.core_type<tc>, window_params = [{pipeline_mode = #tpu.pipeline_mode<synchronous>, transform_indices = @transform_0, window_bounds = array<i64: 8, 144>}, {transform_indices = @transform_1, window_bounds = array<i64: 144, 18>}, {pipeline_mode = #tpu.pipeline_mode<synchronous>, transform_indices = @transform_2, window_bounds = array<i64: 8, 1>}, {transform_indices = @transform_3, window_bounds = array<i64: 8, 18>}]} {
    %c0 = arith.constant 0 : index
    %c0_0 = arith.constant 0 : index
    %0 = vector.load %arg1[%c0, %c0_0] : memref<8x144xbf16, #tpu.memory_space<vmem>>, vector<8x144xbf16>
    %c0_1 = arith.constant 0 : index
    %c0_2 = arith.constant 0 : index
    %1 = vector.load %arg2[%c0_1, %c0_2] : memref<144x18xbf16, #tpu.memory_space<vmem>>, vector<144x18xbf16>
    %cst = arith.constant dense<0.000000e+00> : vector<8x18xf32>
    %2 = tpu.matmul %0, %1, %cst {dimension_numbers = #tpu.dot_dimension_numbers<[1], [0], [0], [1], [0, 0, 1, 1], [], []>} : vector<8x144xbf16>, vector<144x18xbf16>, vector<8x18xf32> -> vector<8x18xf32>
    %c0_3 = arith.constant 0 : index
    %c0_4 = arith.constant 0 : index
    %3 = vector.load %arg3[%c0_3, %c0_4] : memref<8x1xf32, #tpu.memory_space<vmem>>, vector<8x1xf32>
    %4 = vector.broadcast %3 : vector<8x1xf32> to vector<8x18xf32>
    %5 = arith.addf %2, %4 : vector<8x18xf32>
    %cst_5 = arith.constant 0.000000e+00 : f32
    %6 = vector.broadcast %cst_5 : f32 to vector<8x18xf32>
    %7 = arith.maximumf %5, %6 : vector<8x18xf32>
    %c0_6 = arith.constant 0 : index
    %c0_7 = arith.constant 0 : index
    %8 = vector.load %arg4[%c0_6, %c0_7] : memref<8x18xf32, #tpu.memory_space<vmem>>, vector<8x18xf32>
    tpu.vector_store %arg4[%c0_6, %c0_7], %7 {strides = array<i32>} : memref<8x18xf32, #tpu.memory_space<vmem>>, vector<8x18xf32>,
    return
  }
  func.func @transform_0(%arg0: i32) -> (i32, i32) {
    %c0_i32 = arith.constant 0 : i32
    %c0_i32_0 = arith.constant 0 : i32
    %c0_i32_1 = arith.constant 0 : i32
    return %c0_i32, %c0_i32_0 : i32, i32
  }
  func.func @transform_1(%arg0: i32) -> (i32, i32) {
    %c0_i32 = arith.constant 0 : i32
    %c0_i32_0 = arith.constant 0 : i32
    return %c0_i32, %arg0 : i32, i32
  }
  func.func @transform_2(%arg0: i32) -> (i32, i32) {
    %c0_i32 = arith.constant 0 : i32
    %c0_i32_0 = arith.constant 0 : i32
    %c0_i32_1 = arith.constant 0 : i32
    return %c0_i32, %c0_i32_0 : i32, i32
  }
  func.func @transform_3(%arg0: i32) -> (i32, i32) {
    %c0_i32 = arith.constant 0 : i32
    %c0_i32_0 = arith.constant 0 : i32
    return %c0_i32, %arg0 : i32, i32
  }
}

module attributes {stable_mosaic.version = 11 : i64} {
  func.func @_max_reduce_kernel(%arg0: i32, %arg1: memref<4x64xf32, #tpu.memory_space<vmem>>, %arg2: memref<1x64xf32, #tpu.memory_space<vmem>>) attributes {dimension_semantics = [#tpu.dimension_semantics<parallel>], iteration_bounds = array<i64: 1>, scalar_prefetch = 0 : i64, scratch_operands = 0 : i64, tpu.core_type = #tpu.core_type<tc>, window_params = [{transform_indices = @transform_0, window_bounds = array<i64: 4, 64>}, {transform_indices = @transform_1, window_bounds = array<i64: 1, 64>}]} {
    %c0 = arith.constant 0 : index
    %c0_0 = arith.constant 0 : index
    %0 = vector.load %arg1[%c0, %c0_0] : memref<4x64xf32, #tpu.memory_space<vmem>>, vector<1x64xf32>
    %c1 = arith.constant 1 : index
    %c0_1 = arith.constant 0 : index
    %1 = vector.load %arg1[%c1, %c0_1] : memref<4x64xf32, #tpu.memory_space<vmem>>, vector<1x64xf32>
    %2 = arith.maximumf %0, %1 : vector<1x64xf32>
    %c2 = arith.constant 2 : index
    %c0_2 = arith.constant 0 : index
    %3 = vector.load %arg1[%c2, %c0_2] : memref<4x64xf32, #tpu.memory_space<vmem>>, vector<1x64xf32>
    %4 = arith.maximumf %2, %3 : vector<1x64xf32>
    %c3 = arith.constant 3 : index
    %c0_3 = arith.constant 0 : index
    %5 = vector.load %arg1[%c3, %c0_3] : memref<4x64xf32, #tpu.memory_space<vmem>>, vector<1x64xf32>
    %6 = arith.maximumf %4, %5 : vector<1x64xf32>
    %c0_4 = arith.constant 0 : index
    %c0_5 = arith.constant 0 : index
    %7 = vector.load %arg2[%c0_4, %c0_5] : memref<1x64xf32, #tpu.memory_space<vmem>>, vector<1x64xf32>
    tpu.vector_store %arg2[%c0_4, %c0_5], %6 {strides = array<i32>} : memref<1x64xf32, #tpu.memory_space<vmem>>, vector<1x64xf32>,
    return
  }
  func.func @transform_0(%arg0: i32) -> (i32, i32) {
    %c0_i32 = arith.constant 0 : i32
    %c0_i32_0 = arith.constant 0 : i32
    return %c0_i32, %arg0 : i32, i32
  }
  func.func @transform_1(%arg0: i32) -> (i32, i32) {
    %c0_i32 = arith.constant 0 : i32
    %c0_i32_0 = arith.constant 0 : i32
    return %c0_i32, %arg0 : i32, i32
  }
}

module attributes {stable_mosaic.version = 11 : i64} {
  func.func @_matmul_bias_act_kernel(%arg0: i32, %arg1: memref<16x72xbf16, #tpu.memory_space<vmem>>, %arg2: memref<72x50xbf16, #tpu.memory_space<vmem>>, %arg3: memref<16x1xf32, #tpu.memory_space<vmem>>, %arg4: memref<16x50xf32, #tpu.memory_space<vmem>>) attributes {dimension_semantics = [#tpu.dimension_semantics<parallel>], iteration_bounds = array<i64: 1>, scalar_prefetch = 0 : i64, scratch_operands = 0 : i64, tpu.core_type = #tpu.core_type<tc>, window_params = [{pipeline_mode = #tpu.pipeline_mode<synchronous>, transform_indices = @transform_0, window_bounds = array<i64: 16, 72>}, {transform_indices = @transform_1, window_bounds = array<i64: 72, 50>}, {pipeline_mode = #tpu.pipeline_mode<synchronous>, transform_indices = @transform_2, window_bounds = array<i64: 16, 1>}, {transform_indices = @transform_3, window_bounds = array<i64: 16, 50>}]} {
    %c0 = arith.constant 0 : index
    %c0_0 = arith.constant 0 : index
    %0 = vector.load %arg1[%c0, %c0_0] : memref<16x72xbf16, #tpu.memory_space<vmem>>, vector<16x72xbf16>
    %c0_1 = arith.constant 0 : index
    %c0_2 = arith.constant 0 : index
    %1 = vector.load %arg2[%c0_1, %c0_2] : memref<72x50xbf16, #tpu.memory_space<vmem>>, vector<72x50xbf16>
    %cst = arith.constant dense<0.000000e+00> : vector<16x50xf32>
    %2 = tpu.matmul %0, %1, %cst {dimension_numbers = #tpu.dot_dimension_numbers<[1], [0], [0], [1], [0, 0, 1, 1], [], []>} : vector<16x72xbf16>, vector<72x50xbf16>, vector<16x50xf32> -> vector<16x50xf32>
    %c0_3 = arith.constant 0 : index
    %c0_4 = arith.constant 0 : index
    %3 = vector.load %arg3[%c0_3, %c0_4] : memref<16x1xf32, #tpu.memory_space<vmem>>, vector<16x1xf32>
    %4 = vector.broadcast %3 : vector<16x1xf32> to vector<16x50xf32>
    %5 = arith.addf %2, %4 : vector<16x50xf32>
    %cst_5 = arith.constant 0.000000e+00 : f32
    %6 = vector.broadcast %cst_5 : f32 to vector<16x50xf32>
    %7 = arith.maximumf %5, %6 : vector<16x50xf32>
    %c0_6 = arith.constant 0 : index
    %c0_7 = arith.constant 0 : index
    %8 = vector.load %arg4[%c0_6, %c0_7] : memref<16x50xf32, #tpu.memory_space<vmem>>, vector<16x50xf32>
    tpu.vector_store %arg4[%c0_6, %c0_7], %7 {strides = array<i32>} : memref<16x50xf32, #tpu.memory_space<vmem>>, vector<16x50xf32>,
    return
  }
  func.func @transform_0(%arg0: i32) -> (i32, i32) {
    %c0_i32 = arith.constant 0 : i32
    %c0_i32_0 = arith.constant 0 : i32
    %c0_i32_1 = arith.constant 0 : i32
    return %c0_i32, %c0_i32_0 : i32, i32
  }
  func.func @transform_1(%arg0: i32) -> (i32, i32) {
    %c0_i32 = arith.constant 0 : i32
    %c0_i32_0 = arith.constant 0 : i32
    return %c0_i32, %arg0 : i32, i32
  }
  func.func @transform_2(%arg0: i32) -> (i32, i32) {
    %c0_i32 = arith.constant 0 : i32
    %c0_i32_0 = arith.constant 0 : i32
    %c0_i32_1 = arith.constant 0 : i32
    return %c0_i32, %c0_i32_0 : i32, i32
  }
  func.func @transform_3(%arg0: i32) -> (i32, i32) {
    %c0_i32 = arith.constant 0 : i32
    %c0_i32_0 = arith.constant 0 : i32
    return %c0_i32, %arg0 : i32, i32
  }
}

module attributes {stable_mosaic.version = 11 : i64} {
  func.func @_matmul_bias_act_kernel(%arg0: i32, %arg1: memref<8x400xbf16, #tpu.memory_space<vmem>>, %arg2: memref<400x450xbf16, #tpu.memory_space<vmem>>, %arg3: memref<8x1xf32, #tpu.memory_space<vmem>>, %arg4: memref<8x450xf32, #tpu.memory_space<vmem>>) attributes {dimension_semantics = [#tpu.dimension_semantics<parallel>], iteration_bounds = array<i64: 1>, scalar_prefetch = 0 : i64, scratch_operands = 0 : i64, tpu.core_type = #tpu.core_type<tc>, window_params = [{pipeline_mode = #tpu.pipeline_mode<synchronous>, transform_indices = @transform_0, window_bounds = array<i64: 8, 400>}, {transform_indices = @transform_1, window_bounds = array<i64: 400, 450>}, {pipeline_mode = #tpu.pipeline_mode<synchronous>, transform_indices = @transform_2, window_bounds = array<i64: 8, 1>}, {transform_indices = @transform_3, window_bounds = array<i64: 8, 450>}]} {
    %c0 = arith.constant 0 : index
    %c0_0 = arith.constant 0 : index
    %0 = vector.load %arg1[%c0, %c0_0] : memref<8x400xbf16, #tpu.memory_space<vmem>>, vector<8x400xbf16>
    %c0_1 = arith.constant 0 : index
    %c0_2 = arith.constant 0 : index
    %1 = vector.load %arg2[%c0_1, %c0_2] : memref<400x450xbf16, #tpu.memory_space<vmem>>, vector<400x450xbf16>
    %cst = arith.constant dense<0.000000e+00> : vector<8x450xf32>
    %2 = tpu.matmul %0, %1, %cst {dimension_numbers = #tpu.dot_dimension_numbers<[1], [0], [0], [1], [0, 0, 1, 1], [], []>} : vector<8x400xbf16>, vector<400x450xbf16>, vector<8x450xf32> -> vector<8x450xf32>
    %c0_3 = arith.constant 0 : index
    %c0_4 = arith.constant 0 : index
    %3 = vector.load %arg3[%c0_3, %c0_4] : memref<8x1xf32, #tpu.memory_space<vmem>>, vector<8x1xf32>
    %4 = vector.broadcast %3 : vector<8x1xf32> to vector<8x450xf32>
    %5 = arith.addf %2, %4 : vector<8x450xf32>
    %cst_5 = arith.constant 0.000000e+00 : f32
    %6 = vector.broadcast %cst_5 : f32 to vector<8x450xf32>
    %7 = arith.maximumf %5, %6 : vector<8x450xf32>
    %c0_6 = arith.constant 0 : index
    %c0_7 = arith.constant 0 : index
    %8 = vector.load %arg4[%c0_6, %c0_7] : memref<8x450xf32, #tpu.memory_space<vmem>>, vector<8x450xf32>
    tpu.vector_store %arg4[%c0_6, %c0_7], %7 {strides = array<i32>} : memref<8x450xf32, #tpu.memory_space<vmem>>, vector<8x450xf32>,
    return
  }
  func.func @transform_0(%arg0: i32) -> (i32, i32) {
    %c0_i32 = arith.constant 0 : i32
    %c0_i32_0 = arith.constant 0 : i32
    %c0_i32_1 = arith.constant 0 : i32
    return %c0_i32, %c0_i32_0 : i32, i32
  }
  func.func @transform_1(%arg0: i32) -> (i32, i32) {
    %c0_i32 = arith.constant 0 : i32
    %c0_i32_0 = arith.constant 0 : i32
    return %c0_i32, %arg0 : i32, i32
  }
  func.func @transform_2(%arg0: i32) -> (i32, i32) {
    %c0_i32 = arith.constant 0 : i32
    %c0_i32_0 = arith.constant 0 : i32
    %c0_i32_1 = arith.constant 0 : i32
    return %c0_i32, %c0_i32_0 : i32, i32
  }
  func.func @transform_3(%arg0: i32) -> (i32, i32) {
    %c0_i32 = arith.constant 0 : i32
    %c0_i32_0 = arith.constant 0 : i32
    return %c0_i32, %arg0 : i32, i32
  }
}

module attributes {stable_mosaic.version = 11 : i64} {
  func.func @_matmul_bias_act_kernel(%arg0: i32, %arg1: memref<1x32xbf16, #tpu.memory_space<vmem>>, %arg2: memref<32x512xbf16, #tpu.memory_space<vmem>>, %arg3: memref<1x1xf32, #tpu.memory_space<vmem>>, %arg4: memref<1x512xf32, #tpu.memory_space<vmem>>) attributes {dimension_semantics = [#tpu.dimension_semantics<parallel>], iteration_bounds = array<i64: 4>, scalar_prefetch = 0 : i64, scratch_operands = 0 : i64, tpu.core_type = #tpu.core_type<tc>, window_params = [{pipeline_mode = #tpu.pipeline_mode<synchronous>, transform_indices = @transform_0, window_bounds = array<i64: 1, 32>}, {transform_indices = @transform_1, window_bounds = array<i64: 32, 512>}, {pipeline_mode = #tpu.pipeline_mode<synchronous>, transform_indices = @transform_2, window_bounds = array<i64: 1, 1>}, {transform_indices = @transform_3, window_bounds = array<i64: 1, 512>}]} {
    %c0 = arith.constant 0 : index
    %c0_0 = arith.constant 0 : index
    %0 = vector.load %arg1[%c0, %c0_0] : memref<1x32xbf16, #tpu.memory_space<vmem>>, vector<1x32xbf16>
    %c0_1 = arith.constant 0 : index
    %c0_2 = arith.constant 0 : index
    %1 = vector.load %arg2[%c0_1, %c0_2] : memref<32x512xbf16, #tpu.memory_space<vmem>>, vector<32x512xbf16>
    %cst = arith.constant dense<0.000000e+00> : vector<1x512xf32>
    %2 = tpu.matmul %0, %1, %cst {dimension_numbers = #tpu.dot_dimension_numbers<[1], [0], [0], [1], [0, 0, 1, 1], [], []>} : vector<1x32xbf16>, vector<32x512xbf16>, vector<1x512xf32> -> vector<1x512xf32>
    %c0_3 = arith.constant 0 : index
    %c0_4 = arith.constant 0 : index
    %3 = vector.load %arg3[%c0_3, %c0_4] : memref<1x1xf32, #tpu.memory_space<vmem>>, vector<1x1xf32>
    %4 = vector.broadcast %3 : vector<1x1xf32> to vector<1x512xf32>
    %5 = arith.addf %2, %4 : vector<1x512xf32>
    %6 = math.tanh %5 : vector<1x512xf32>
    %c0_5 = arith.constant 0 : index
    %c0_6 = arith.constant 0 : index
    %7 = vector.load %arg4[%c0_5, %c0_6] : memref<1x512xf32, #tpu.memory_space<vmem>>, vector<1x512xf32>
    tpu.vector_store %arg4[%c0_5, %c0_6], %6 {strides = array<i32>} : memref<1x512xf32, #tpu.memory_space<vmem>>, vector<1x512xf32>,
    return
  }
  func.func @transform_0(%arg0: i32) -> (i32, i32) {
    %c0_i32 = arith.constant 0 : i32
    %c0_i32_0 = arith.constant 0 : i32
    %c0_i32_1 = arith.constant 0 : i32
    return %c0_i32, %c0_i32_0 : i32, i32
  }
  func.func @transform_1(%arg0: i32) -> (i32, i32) {
    %c0_i32 = arith.constant 0 : i32
    %c0_i32_0 = arith.constant 0 : i32
    return %c0_i32, %arg0 : i32, i32
  }
  func.func @transform_2(%arg0: i32) -> (i32, i32) {
    %c0_i32 = arith.constant 0 : i32
    %c0_i32_0 = arith.constant 0 : i32
    %c0_i32_1 = arith.constant 0 : i32
    return %c0_i32, %c0_i32_0 : i32, i32
  }
  func.func @transform_3(%arg0: i32) -> (i32, i32) {
    %c0_i32 = arith.constant 0 : i32
    %c0_i32_0 = arith.constant 0 : i32
    return %c0_i32, %arg0 : i32, i32
  }
}

</mosaic_0001>

<llo_original>
// kernel: conv_autoencoder_forward.7
$region0: #{conv_autoencoder_forward.7}
  #allocation0 [shape = 'u32[]', space=smem, size = 0x4, offset = 0x4, fixed_abs, tag = 'smem constant byte address 0x4 - core index']
  #allocation1 [shape = 'u32[144,128]{1,0:T(1,128)}', space=vmem, size = 0x12000, scoped, tag = 'internal scratch']
  %s0 = inlined_call_operand.vmem [shape: bf16[16,9], index: 0, kind: input, shape index: {}]
  %s1 = inlined_call_operand.vmem [shape: bf16[9,200], index: 1, kind: input, shape index: {}]
  %s2 = inlined_call_operand.vmem [shape: f32[16,1], index: 2, kind: input, shape index: {}]
  %s3 = inlined_call_operand.vmem [shape: f32[16,200], index: 3, kind: output, shape index: {}]
  %s4 = sld [smem:[#allocation0]]
  $region22: #{conv_autoencoder_forward.7} parent=0
    _
  %s6 = ssub.s32 1, %s4
  %s7 = scalar_select 0, %s6, %s4
  // Predicated region
  $region2: #{conv_autoencoder_forward.7} parent=0 // pred_check
    _
  $region3: #{conv_autoencoder_forward.7} parent=0 // pred_check_branch
    %9 = sbr.rel (0) target = $region5
  $region4: #{conv_autoencoder_forward.7} parent=0 // pred_region
    _
  $region5: #{conv_autoencoder_forward.7} parent=0 // pred_fallthru
    _
  // Predicated region
  $region6: #{conv_autoencoder_forward.7} parent=0 // pred_check
    _
  $region7: #{conv_autoencoder_forward.7} parent=0 // pred_check_branch
    %11 = sbr.rel (0) target = $region9
  $region8: #{conv_autoencoder_forward.7} parent=0 // pred_region
    _
  $region9: #{conv_autoencoder_forward.7} parent=0 // pred_fallthru
    _
  // Predicated region
  $region10: #{conv_autoencoder_forward.7} parent=0 // pred_check
    _
  $region11: #{conv_autoencoder_forward.7} parent=0 // pred_check_branch
    %13 = sbr.rel (0) target = $region13
  $region12: #{conv_autoencoder_forward.7} parent=0 // pred_region
    _
  $region13: #{conv_autoencoder_forward.7} parent=0 // pred_fallthru
    _
  %v15 = vld [vmem:[%s0] sm:$0xf]
  %v16 = vld [vmem:[%s0 + $0x4] sm:$0xf]
  %v17 = vld [vmem:[%s1] sm:$0xff]
  %v18 = vld [vmem:[%s1 + $0x8] sm:$0x11]
  %v19 = vld [vmem:[%s2] sm:$0xff]
  %v20 = vld [vmem:[%s2 + $0x8] sm:$0xff]
  %22 = vset.pattern.permute.xlu0 0
  %23 = vperm.xlu0 %22, %v19
  %v24 = vpop.permute.xlu0 %23
  %27 = vset.pattern.permute.xlu0 0
  %28 = vperm.xlu0 %27, %v20
  %v29 = vpop.permute.xlu0 %28
  %v33 = vunpack.c.l.b16 %v15
  %v34 = vunpack.c.l.b16 %v16
  %v35 = vpack.c.b16 %v34, %v33
  %v38 = vunpack.c.l.b16 %v17
  %v39 = vunpack.c.h.b16 %v17
  %v40 = vunpack.c.l.b16 %v18
  %v41 = vunpack.c.h.b16 %v18
  %v42 = vpack.c.b16 %v40, %v38
  %v43 = vpack.c.b16 %v41, %v39
  %vm44 = vcmask 72704
  %v46 = vsel %vm44, %v35, 0
  %vm48 = vcmask 1043456
  %vm49 = vcmask 1044480
  %v50 = vsel %vm48, 4294967295, 65535
  %v51 = vsel %vm49, %v50, 0
  %v53 = vand.u32 %v42, %v51
  %v56 = vand.u32 %v43, %v51
  %58 = vmatprep.subr.bf16.mxu0 %v56
  %59 = vmatpush1.bf16.msra.mxu0 %v53
  %60 = vmatprep.subr.bf16.mxu0 0
  %61 = vmatpush1.bf16.msra.mxu0 0
  %62 = vmatprep.subr.bf16.mxu0 0
  %63 = vmatpush1.bf16.msra.mxu0 0
  %64 = vmatprep.subr.bf16.mxu0 0
  %65 = vmatpush1.bf16.msra.mxu0 0
  %66 = vmatprep.subr.bf16.mxu0 0
  %67 = vmatpush1.bf16.msra.mxu0 0
  %68 = vmatprep.subr.bf16.mxu0 0
  %69 = vmatpush1.bf16.msra.mxu0 0
  %70 = vmatprep.subr.bf16.mxu0 0
  %71 = vmatpush1.bf16.msra.mxu0 0
  %72 = vmatprep.subr.bf16.mxu0 0
  %73 = vmatpush1.bf16.msra.mxu0 0
  %74 = vmatprep.subr.bf16.mxu0 0
  %75 = vmatpush1.bf16.msra.mxu0 0
  %76 = vmatprep.subr.bf16.mxu0 0
  %77 = vmatpush1.bf16.msra.mxu0 0
  %78 = vmatprep.subr.bf16.mxu0 0
  %79 = vmatpush1.bf16.msra.mxu0 0
  %80 = vmatprep.subr.bf16.mxu0 0
  %81 = vmatpush1.bf16.msra.mxu0 0
  %82 = vmatprep.subr.bf16.mxu0 0
  %83 = vmatpush1.bf16.msra.mxu0 0
  %84 = vmatprep.subr.bf16.mxu0 0
  %85 = vmatpush1.bf16.msra.mxu0 0
  %86 = vmatprep.subr.bf16.mxu0 0
  %87 = vmatpush1.bf16.msra.mxu0 0
  %88 = vmatprep.subr.bf16.mxu0 0
  %89 = vmatpush1.bf16.msra.mxu0 0
  %90 = vmatprep.mubr.bf16.mxu0 0
  %91 = vmatmul.mubr.bf16.gmra.mrb[0].mxu0 %v46
  %v92 = vpop.f32.mrb[0].mxu0
  %v93 = vadd.f32 %v24, %v92
  %v94 = vpop.f32.mrb[0].mxu0
  %v95 = vadd.f32 %v24, %v94
  %v96 = vpop.f32.mrb[0].mxu0
  %v97 = vadd.f32 %v29, %v96
  %v98 = vpop.f32.mrb[0].mxu0
  %v99 = vadd.f32 %v29, %v98
  %100 = vdwg.mxu0
  %v101 = vmax.f32 %v93, 0.0
  %v102 = vmax.f32 %v95, 0.0
  %v103 = vmax.f32 %v97, 0.0
  %v104 = vmax.f32 %v99, 0.0
  %105 = vst [vmem:[%s3] sm:$0xff] %v101
  %vm106 = vcmask 588800
  %107 = vst.msk [vmem:[%s3 + $0x8] sm:$0xff] %vm106, %v102
  %108 = vst [vmem:[%s3 + $0x10] sm:$0xff] %v103
  %109 = vst.msk [vmem:[%s3 + $0x18] sm:$0xff] %vm106, %v104
  // Predicated region
  $region14: #{conv_autoencoder_forward.7} parent=0 // pred_check
    _
  $region15: #{conv_autoencoder_forward.7} parent=0 // pred_check_branch
    %111 = sbr.rel (0) target = $region17
  $region16: #{conv_autoencoder_forward.7} parent=0 // pred_region
    _
  $region17: #{conv_autoencoder_forward.7} parent=0 // pred_fallthru
    _
  // Predicated region
  $region18: #{conv_autoencoder_forward.7} parent=0 // pred_check
    _
  $region19: #{conv_autoencoder_forward.7} parent=0 // pred_check_branch
    %113 = sbr.rel (0) target = $region21
  $region20: #{conv_autoencoder_forward.7} parent=0 // pred_region
    _
  $region21: #{conv_autoencoder_forward.7} parent=0 // pred_fallthru
    _

// kernel: conv_autoencoder_forward.8
$region0: #{conv_autoencoder_forward.8}
  #allocation0 [shape = 'u32[]', space=smem, size = 0x4, offset = 0x4, fixed_abs, tag = 'smem constant byte address 0x4 - core index']
  #allocation1 [shape = 'u32[144,128]{1,0:T(1,128)}', space=vmem, size = 0x12000, scoped, tag = 'internal scratch']
  %s0 = inlined_call_operand.vmem [shape: f32[4,800], index: 0, kind: input, shape index: {}]
  %s1 = inlined_call_operand.vmem [shape: f32[1,800], index: 1, kind: output, shape index: {}]
  %s2 = sld [smem:[#allocation0]]
  $region14: #{conv_autoencoder_forward.8} parent=0
    _
  %s4 = ssub.s32 1, %s2
  %s5 = scalar_select 0, %s4, %s2
  // Predicated region
  $region2: #{conv_autoencoder_forward.8} parent=0 // pred_check
    _
  $region3: #{conv_autoencoder_forward.8} parent=0 // pred_check_branch
    %7 = sbr.rel (0) target = $region5
  $region4: #{conv_autoencoder_forward.8} parent=0 // pred_region
    _
  $region5: #{conv_autoencoder_forward.8} parent=0 // pred_fallthru
    _
  %v8 = vld [vmem:[%s0] ss:$4 sm:$0x7f]
  %s9 = scalar_lea.vmem %s0, 1
  %v10 = vld [vmem:[%s9] ss:$4 sm:$0x7f]
  %v11 = vmax.f32 %v8, %v10
  %s12 = scalar_lea.vmem %s0, 2
  %v13 = vld [vmem:[%s12] ss:$4 sm:$0x7f]
  %v14 = vmax.f32 %v11, %v13
  %s15 = scalar_lea.vmem %s0, 3
  %v16 = vld [vmem:[%s15] ss:$4 sm:$0x7f]
  %v17 = vmax.f32 %v14, %v16
  %v18 = vlaneseq
  %vm19 = vcmp.ge.s32.totalorder %v18, 0
  %vm20 = vcmp.lt.s32.totalorder %v18, 800
  %vm21 = vmand %vm19, %vm20
  %22 = vst.msk [vmem:[%s1] sm:$0x7f] %vm21, %v17
  // Predicated region
  $region6: #{conv_autoencoder_forward.8} parent=0 // pred_check
    _
  $region7: #{conv_autoencoder_forward.8} parent=0 // pred_check_branch
    %24 = sbr.rel (0) target = $region9
  $region8: #{conv_autoencoder_forward.8} parent=0 // pred_region
    _
  $region9: #{conv_autoencoder_forward.8} parent=0 // pred_fallthru
    _
  // Predicated region
  $region10: #{conv_autoencoder_forward.8} parent=0 // pred_check
    _
  $region11: #{conv_autoencoder_forward.8} parent=0 // pred_check_branch
    %26 = sbr.rel (0) target = $region13
  $region12: #{conv_autoencoder_forward.8} parent=0 // pred_region
    _
  $region13: #{conv_autoencoder_forward.8} parent=0 // pred_fallthru
    _

// kernel: conv_autoencoder_forward.9
$region0: #{conv_autoencoder_forward.9}
  #allocation0 [shape = 'u32[]', space=smem, size = 0x4, offset = 0x4, fixed_abs, tag = 'smem constant byte address 0x4 - core index']
  #allocation1 [shape = 'u32[144,128]{1,0:T(1,128)}', space=vmem, size = 0x12000, scoped, tag = 'internal scratch']
  %s0 = inlined_call_operand.vmem [shape: bf16[8,144], index: 0, kind: input, shape index: {}]
  %s1 = inlined_call_operand.vmem [shape: bf16[144,18], index: 1, kind: input, shape index: {}]
  %s2 = inlined_call_operand.vmem [shape: f32[8,1], index: 2, kind: input, shape index: {}]
  %s3 = inlined_call_operand.vmem [shape: f32[8,18], index: 3, kind: output, shape index: {}]
  %s4 = sld [smem:[#allocation0]]
  $region22: #{conv_autoencoder_forward.9} parent=0
    _
  %s6 = ssub.s32 1, %s4
  %s7 = scalar_select 0, %s6, %s4
  // Predicated region
  $region2: #{conv_autoencoder_forward.9} parent=0 // pred_check
    _
  $region3: #{conv_autoencoder_forward.9} parent=0 // pred_check_branch
    %9 = sbr.rel (0) target = $region5
  $region4: #{conv_autoencoder_forward.9} parent=0 // pred_region
    _
  $region5: #{conv_autoencoder_forward.9} parent=0 // pred_fallthru
    _
  // Predicated region
  $region6: #{conv_autoencoder_forward.9} parent=0 // pred_check
    _
  $region7: #{conv_autoencoder_forward.9} parent=0 // pred_check_branch
    %11 = sbr.rel (0) target = $region9
  $region8: #{conv_autoencoder_forward.9} parent=0 // pred_region
    _
  $region9: #{conv_autoencoder_forward.9} parent=0 // pred_fallthru
    _
  // Predicated region
  $region10: #{conv_autoencoder_forward.9} parent=0 // pred_check
    _
  $region11: #{conv_autoencoder_forward.9} parent=0 // pred_check_branch
    %13 = sbr.rel (0) target = $region13
  $region12: #{conv_autoencoder_forward.9} parent=0 // pred_region
    _
  $region13: #{conv_autoencoder_forward.9} parent=0 // pred_fallthru
    _
  %v15 = vld [vmem:[%s0] sm:$0xff]
  %v16 = vld [vmem:[%s1] sm:$0xf]
  %v17 = vld [vmem:[%s1 + $0x4] sm:$0xf]
  %v18 = vld [vmem:[%s1 + $0x8] sm:$0xf]
  %v19 = vld [vmem:[%s1 + $0xc] sm:$0xf]
  %v20 = vld [vmem:[%s1 + $0x10] sm:$0xf]
  %v21 = vld [vmem:[%s1 + $0x14] sm:$0xf]
  %v22 = vld [vmem:[%s1 + $0x18] sm:$0xf]
  %v23 = vld [vmem:[%s1 + $0x1c] sm:$0xf]
  %v24 = vld [vmem:[%s1 + $0x20] sm:$0xf]
  %v25 = vld [vmem:[%s1 + $0x24] sm:$0xf]
  %v26 = vld [vmem:[%s1 + $0x28] sm:$0xf]
  %v27 = vld [vmem:[%s1 + $0x2c] sm:$0xf]
  %v28 = vld [vmem:[%s1 + $0x30] sm:$0xf]
  %v29 = vld [vmem:[%s1 + $0x34] sm:$0xf]
  %v30 = vld [vmem:[%s1 + $0x38] sm:$0xf]
  %v31 = vld [vmem:[%s1 + $0x3c] sm:$0xf]
  %v32 = vld [vmem:[%s1 + $0x40] sm:$0xf]
  %v33 = vld [vmem:[%s1 + $0x44] sm:$0xf]
  %v34 = vld [vmem:[%s2] sm:$0xff]
  %36 = vset.pattern.permute.xlu0 0
  %37 = vperm.xlu0 %36, %v34
  %v38 = vpop.permute.xlu0 %37
  %v41 = vunpack.c.l.b16 %v15
  %v42 = vunpack.c.h.b16 %v15
  %v43 = vpack.c.b16 %v41, %v41
  %v44 = vpack.c.b16 %v42, %v42
  %v64 = vunpack.c.l.b16 %v16
  %v65 = vunpack.c.l.b16 %v17
  %v66 = vunpack.c.l.b16 %v18
  %v67 = vunpack.c.l.b16 %v19
  %v68 = vunpack.c.l.b16 %v20
  %v69 = vunpack.c.l.b16 %v21
  %v70 = vunpack.c.l.b16 %v22
  %v71 = vunpack.c.l.b16 %v23
  %v72 = vunpack.c.l.b16 %v24
  %v73 = vunpack.c.l.b16 %v25
  %v74 = vunpack.c.l.b16 %v26
  %v75 = vunpack.c.l.b16 %v27
  %v76 = vunpack.c.l.b16 %v28
  %v77 = vunpack.c.l.b16 %v29
  %v78 = vunpack.c.l.b16 %v30
  %v79 = vunpack.c.l.b16 %v31
  %v80 = vunpack.c.l.b16 %v32
  %v81 = vunpack.c.l.b16 %v33
  %v82 = vpack.c.b16 %v65, %v64
  %v83 = vpack.c.b16 %v67, %v66
  %v84 = vpack.c.b16 %v69, %v68
  %v85 = vpack.c.b16 %v71, %v70
  %v86 = vpack.c.b16 %v73, %v72
  %v87 = vpack.c.b16 %v75, %v74
  %v88 = vpack.c.b16 %v77, %v76
  %v89 = vpack.c.b16 %v79, %v78
  %v90 = vpack.c.b16 %v81, %v80
  %vm100 = vcmask 130048
  %v102 = vsel %vm100, %v44, 0
  %104 = vmatprep.subr.bf16.mxu0 0
  %105 = vmatpush1.bf16.msra.mxu0 %v82
  %106 = vmatprep.subr.bf16.mxu0 0
  %107 = vmatpush1.bf16.msra.mxu0 %v83
  %108 = vmatprep.subr.bf16.mxu0 0
  %109 = vmatpush1.bf16.msra.mxu0 %v84
  %110 = vmatprep.subr.bf16.mxu0 0
  %111 = vmatpush1.bf16.msra.mxu0 %v85
  %112 = vmatprep.subr.bf16.mxu0 0
  %113 = vmatpush1.bf16.msra.mxu0 %v86
  %114 = vmatprep.subr.bf16.mxu0 0
  %115 = vmatpush1.bf16.msra.mxu0 %v87
  %116 = vmatprep.subr.bf16.mxu0 0
  %117 = vmatpush1.bf16.msra.mxu0 %v88
  %118 = vmatprep.subr.bf16.mxu0 0
  %119 = vmatpush1.bf16.msra.mxu0 %v89
  %120 = vmatprep.subr.bf16.mxu0 0
  %121 = vmatpush1.bf16.msra.mxu0 %v90
  %122 = vmatprep.subr.bf16.mxu0 0
  %123 = vmatpush1.bf16.msra.mxu0 0
  %124 = vmatprep.subr.bf16.mxu0 0
  %125 = vmatpush1.bf16.msra.mxu0 0
  %126 = vmatprep.subr.bf16.mxu0 0
  %127 = vmatpush1.bf16.msra.mxu0 0
  %128 = vmatprep.subr.bf16.mxu0 0
  %129 = vmatpush1.bf16.msra.mxu0 0
  %130 = vmatprep.subr.bf16.mxu0 0
  %131 = vmatpush1.bf16.msra.mxu0 0
  %132 = vmatprep.subr.bf16.mxu0 0
  %133 = vmatpush1.bf16.msra.mxu0 0
  %134 = vmatprep.subr.bf16.mxu0 0
  %135 = vmatpush1.bf16.msra.mxu0 0
  %136 = vmatprep.mubr.bf16.mxu0 %v102
  %137 = vmatmul.mubr.bf16.gmra.mrb[0].mxu0 %v43
  %v138 = vpop.f32.mrb[0].mxu0
  %v139 = vadd.f32 %v38, %v138
  %v140 = vpop.f32.mrb[0].mxu0
  %v141 = vpop.f32.mrb[0].mxu0
  %v142 = vpop.f32.mrb[0].mxu0
  %143 = vdwg.mxu0
  %v144 = vmax.f32 %v139, 0.0
  %vm145 = vcmask 146432
  %146 = vst.msk [vmem:[%s3] sm:$0xff] %vm145, %v144
  // Predicated region
  $region14: #{conv_autoencoder_forward.9} parent=0 // pred_check
    _
  $region15: #{conv_autoencoder_forward.9} parent=0 // pred_check_branch
    %148 = sbr.rel (0) target = $region17
  $region16: #{conv_autoencoder_forward.9} parent=0 // pred_region
    _
  $region17: #{conv_autoencoder_forward.9} parent=0 // pred_fallthru
    _
  // Predicated region
  $region18: #{conv_autoencoder_forward.9} parent=0 // pred_check
    _
  $region19: #{conv_autoencoder_forward.9} parent=0 // pred_check_branch
    %150 = sbr.rel (0) target = $region21
  $region20: #{conv_autoencoder_forward.9} parent=0 // pred_region
    _
  $region21: #{conv_autoencoder_forward.9} parent=0 // pred_fallthru
    _

// kernel: conv_autoencoder_forward.10
$region0: #{conv_autoencoder_forward.10}
  #allocation0 [shape = 'u32[]', space=smem, size = 0x4, offset = 0x4, fixed_abs, tag = 'smem constant byte address 0x4 - core index']
  #allocation1 [shape = 'u32[144,128]{1,0:T(1,128)}', space=vmem, size = 0x12000, scoped, tag = 'internal scratch']
  %s0 = inlined_call_operand.vmem [shape: f32[4,64], index: 0, kind: input, shape index: {}]
  %s1 = inlined_call_operand.vmem [shape: f32[1,64], index: 1, kind: output, shape index: {}]
  %s2 = sld [smem:[#allocation0]]
  $region14: #{conv_autoencoder_forward.10} parent=0
    _
  %s4 = ssub.s32 1, %s2
  %s5 = scalar_select 0, %s4, %s2
  // Predicated region
  $region2: #{conv_autoencoder_forward.10} parent=0 // pred_check
    _
  $region3: #{conv_autoencoder_forward.10} parent=0 // pred_check_branch
    %7 = sbr.rel (0) target = $region5
  $region4: #{conv_autoencoder_forward.10} parent=0 // pred_region
    _
  $region5: #{conv_autoencoder_forward.10} parent=0 // pred_fallthru
    _
  %v8 = vld [vmem:[%s0] sm:$0x1]
  %v9 = vld [vmem:[%s0 + $0x1] sm:$0x1]
  %v10 = vmax.f32 %v8, %v9
  %v11 = vld [vmem:[%s0 + $0x2] sm:$0x1]
  %v12 = vmax.f32 %v10, %v11
  %v13 = vld [vmem:[%s0 + $0x3] sm:$0x1]
  %v14 = vmax.f32 %v12, %v13
  %vm15 = vcmask 516096
  %16 = vst.msk [vmem:[%s1] sm:$0x1] %vm15, %v14
  // Predicated region
  $region6: #{conv_autoencoder_forward.10} parent=0 // pred_check
    _
  $region7: #{conv_autoencoder_forward.10} parent=0 // pred_check_branch
    %18 = sbr.rel (0) target = $region9
  $region8: #{conv_autoencoder_forward.10} parent=0 // pred_region
    _
  $region9: #{conv_autoencoder_forward.10} parent=0 // pred_fallthru
    _
  // Predicated region
  $region10: #{conv_autoencoder_forward.10} parent=0 // pred_check
    _
  $region11: #{conv_autoencoder_forward.10} parent=0 // pred_check_branch
    %20 = sbr.rel (0) target = $region13
  $region12: #{conv_autoencoder_forward.10} parent=0 // pred_region
    _
  $region13: #{conv_autoencoder_forward.10} parent=0 // pred_fallthru
    _

// kernel: conv_autoencoder_forward.11
$region0: #{conv_autoencoder_forward.11}
  #allocation0 [shape = 'u32[]', space=smem, size = 0x4, offset = 0x4, fixed_abs, tag = 'smem constant byte address 0x4 - core index']
  #allocation1 [shape = 'u32[144,128]{1,0:T(1,128)}', space=vmem, size = 0x12000, scoped, tag = 'internal scratch']
  %s0 = inlined_call_operand.vmem [shape: bf16[16,72], index: 0, kind: input, shape index: {}]
  %s1 = inlined_call_operand.vmem [shape: bf16[72,50], index: 1, kind: input, shape index: {}]
  %s2 = inlined_call_operand.vmem [shape: f32[16,1], index: 2, kind: input, shape index: {}]
  %s3 = inlined_call_operand.vmem [shape: f32[16,50], index: 3, kind: output, shape index: {}]
  %s4 = sld [smem:[#allocation0]]
  $region22: #{conv_autoencoder_forward.11} parent=0
    _
  %s6 = ssub.s32 1, %s4
  %s7 = scalar_select 0, %s6, %s4
  // Predicated region
  $region2: #{conv_autoencoder_forward.11} parent=0 // pred_check
    _
  $region3: #{conv_autoencoder_forward.11} parent=0 // pred_check_branch
    %9 = sbr.rel (0) target = $region5
  $region4: #{conv_autoencoder_forward.11} parent=0 // pred_region
    _
  $region5: #{conv_autoencoder_forward.11} parent=0 // pred_fallthru
    _
  // Predicated region
  $region6: #{conv_autoencoder_forward.11} parent=0 // pred_check
    _
  $region7: #{conv_autoencoder_forward.11} parent=0 // pred_check_branch
    %11 = sbr.rel (0) target = $region9
  $region8: #{conv_autoencoder_forward.11} parent=0 // pred_region
    _
  $region9: #{conv_autoencoder_forward.11} parent=0 // pred_fallthru
    _
  // Predicated region
  $region10: #{conv_autoencoder_forward.11} parent=0 // pred_check
    _
  $region11: #{conv_autoencoder_forward.11} parent=0 // pred_check_branch
    %13 = sbr.rel (0) target = $region13
  $region12: #{conv_autoencoder_forward.11} parent=0 // pred_region
    _
  $region13: #{conv_autoencoder_forward.11} parent=0 // pred_fallthru
    _
  %v15 = vld [vmem:[%s0] sm:$0xf]
  %v16 = vld [vmem:[%s0 + $0x4] sm:$0xf]
  %v17 = vld [vmem:[%s1] sm:$0xf]
  %v18 = vld [vmem:[%s1 + $0x4] sm:$0xf]
  %v19 = vld [vmem:[%s1 + $0x8] sm:$0xf]
  %v20 = vld [vmem:[%s1 + $0xc] sm:$0xf]
  %v21 = vld [vmem:[%s1 + $0x10] sm:$0xf]
  %v22 = vld [vmem:[%s1 + $0x14] sm:$0xf]
  %v23 = vld [vmem:[%s1 + $0x18] sm:$0xf]
  %v24 = vld [vmem:[%s1 + $0x1c] sm:$0xf]
  %v25 = vld [vmem:[%s1 + $0x20] sm:$0xf]
  %v26 = vld [vmem:[%s2] sm:$0xff]
  %v27 = vld [vmem:[%s2 + $0x8] sm:$0xff]
  %29 = vset.pattern.permute.xlu0 0
  %30 = vperm.xlu0 %29, %v26
  %v31 = vpop.permute.xlu0 %30
  %34 = vset.pattern.permute.xlu0 0
  %35 = vperm.xlu0 %34, %v27
  %v36 = vpop.permute.xlu0 %35
  %v40 = vunpack.c.l.b16 %v15
  %v41 = vunpack.c.l.b16 %v16
  %v42 = vpack.c.b16 %v41, %v40
  %v52 = vunpack.c.l.b16 %v17
  %v53 = vunpack.c.l.b16 %v18
  %v54 = vunpack.c.l.b16 %v19
  %v55 = vunpack.c.l.b16 %v20
  %v56 = vunpack.c.l.b16 %v21
  %v57 = vunpack.c.l.b16 %v22
  %v58 = vunpack.c.l.b16 %v23
  %v59 = vunpack.c.l.b16 %v24
  %v60 = vunpack.c.l.b16 %v25
  %v61 = vpack.c.b16 %v53, %v52
  %v62 = vpack.c.b16 %v55, %v54
  %v63 = vpack.c.b16 %v57, %v56
  %v64 = vpack.c.b16 %v59, %v58
  %v65 = vpack.c.b16 %v60, %v60
  %vm70 = vcmask 588800
  %v72 = vsel %vm70, %v42, 0
  %vm74 = vcmask 1043456
  %v76 = vsel %vm74, %v65, 0
  %78 = vmatprep.subr.bf16.mxu0 0
  %79 = vmatpush1.bf16.msra.mxu0 %v61
  %80 = vmatprep.subr.bf16.mxu0 0
  %81 = vmatpush1.bf16.msra.mxu0 %v62
  %82 = vmatprep.subr.bf16.mxu0 0
  %83 = vmatpush1.bf16.msra.mxu0 %v63
  %84 = vmatprep.subr.bf16.mxu0 0
  %85 = vmatpush1.bf16.msra.mxu0 %v64
  %86 = vmatprep.subr.bf16.mxu0 0
  %87 = vmatpush1.bf16.msra.mxu0 %v76
  %88 = vmatprep.subr.bf16.mxu0 0
  %89 = vmatpush1.bf16.msra.mxu0 0
  %90 = vmatprep.subr.bf16.mxu0 0
  %91 = vmatpush1.bf16.msra.mxu0 0
  %92 = vmatprep.subr.bf16.mxu0 0
  %93 = vmatpush1.bf16.msra.mxu0 0
  %94 = vmatprep.subr.bf16.mxu0 0
  %95 = vmatpush1.bf16.msra.mxu0 0
  %96 = vmatprep.subr.bf16.mxu0 0
  %97 = vmatpush1.bf16.msra.mxu0 0
  %98 = vmatprep.subr.bf16.mxu0 0
  %99 = vmatpush1.bf16.msra.mxu0 0
  %100 = vmatprep.subr.bf16.mxu0 0
  %101 = vmatpush1.bf16.msra.mxu0 0
  %102 = vmatprep.subr.bf16.mxu0 0
  %103 = vmatpush1.bf16.msra.mxu0 0
  %104 = vmatprep.subr.bf16.mxu0 0
  %105 = vmatpush1.bf16.msra.mxu0 0
  %106 = vmatprep.subr.bf16.mxu0 0
  %107 = vmatpush1.bf16.msra.mxu0 0
  %108 = vmatprep.subr.bf16.mxu0 0
  %109 = vmatpush1.bf16.msra.mxu0 0
  %110 = vmatprep.mubr.bf16.mxu0 0
  %111 = vmatmul.mubr.bf16.gmra.mrb[0].mxu0 %v72
  %v112 = vpop.f32.mrb[0].mxu0
  %v113 = vadd.f32 %v31, %v112
  %v114 = vpop.f32.mrb[0].mxu0
  %v115 = vpop.f32.mrb[0].mxu0
  %v116 = vadd.f32 %v36, %v115
  %v117 = vpop.f32.mrb[0].mxu0
  %118 = vdwg.mxu0
  %v119 = vmax.f32 %v113, 0.0
  %v120 = vmax.f32 %v116, 0.0
  %vm121 = vcmask 408576
  %122 = vst.msk [vmem:[%s3] sm:$0xff] %vm121, %v119
  %123 = vst.msk [vmem:[%s3 + $0x8] sm:$0xff] %vm121, %v120
  // Predicated region
  $region14: #{conv_autoencoder_forward.11} parent=0 // pred_check
    _
  $region15: #{conv_autoencoder_forward.11} parent=0 // pred_check_branch
    %125 = sbr.rel (0) target = $region17
  $region16: #{conv_autoencoder_forward.11} parent=0 // pred_region
    _
  $region17: #{conv_autoencoder_forward.11} parent=0 // pred_fallthru
    _
  // Predicated region
  $region18: #{conv_autoencoder_forward.11} parent=0 // pred_check
    _
  $region19: #{conv_autoencoder_forward.11} parent=0 // pred_check_branch
    %127 = sbr.rel (0) target = $region21
  $region20: #{conv_autoencoder_forward.11} parent=0 // pred_region
    _
  $region21: #{conv_autoencoder_forward.11} parent=0 // pred_fallthru
    _

// kernel: conv_autoencoder_forward.12
$region0: #{conv_autoencoder_forward.12}
  #allocation0 [shape = 'u32[]', space=smem, size = 0x4, offset = 0x4, fixed_abs, tag = 'smem constant byte address 0x4 - core index']
  #allocation1 [shape = 'u32[144,128]{1,0:T(1,128)}', space=vmem, size = 0x12000, scoped, tag = 'internal scratch']
  %s0 = inlined_call_operand.vmem [shape: bf16[8,400], index: 0, kind: input, shape index: {}]
  %s1 = inlined_call_operand.vmem [shape: bf16[400,450], index: 1, kind: input, shape index: {}]
  %s2 = inlined_call_operand.vmem [shape: f32[8,1], index: 2, kind: input, shape index: {}]
  %s3 = inlined_call_operand.vmem [shape: f32[8,450], index: 3, kind: output, shape index: {}]
  %s4 = sld [smem:[#allocation0]]
  $region22: #{conv_autoencoder_forward.12} parent=0
    _
  %s6 = ssub.s32 1, %s4
  %s7 = scalar_select 0, %s6, %s4
  // Predicated region
  $region2: #{conv_autoencoder_forward.12} parent=0 // pred_check
    _
  $region3: #{conv_autoencoder_forward.12} parent=0 // pred_check_branch
    %9 = sbr.rel (0) target = $region5
  $region4: #{conv_autoencoder_forward.12} parent=0 // pred_region
    _
  $region5: #{conv_autoencoder_forward.12} parent=0 // pred_fallthru
    _
  // Predicated region
  $region6: #{conv_autoencoder_forward.12} parent=0 // pred_check
    _
  $region7: #{conv_autoencoder_forward.12} parent=0 // pred_check_branch
    %11 = sbr.rel (0) target = $region9
  $region8: #{conv_autoencoder_forward.12} parent=0 // pred_region
    _
  $region9: #{conv_autoencoder_forward.12} parent=0 // pred_fallthru
    _
  // Predicated region
  $region10: #{conv_autoencoder_forward.12} parent=0 // pred_check
    _
  $region11: #{conv_autoencoder_forward.12} parent=0 // pred_check_branch
    %13 = sbr.rel (0) target = $region13
  $region12: #{conv_autoencoder_forward.12} parent=0 // pred_region
    _
  $region13: #{conv_autoencoder_forward.12} parent=0 // pred_fallthru
    _
  %v15 = vld [vmem:[%s0] sm:$0xff]
  %v16 = vld [vmem:[%s0 + $0x8] sm:$0xff]
  %v17 = vld [vmem:[%s1] sm:$0xff]
  %v18 = vld [vmem:[%s1 + $0x8] sm:$0xff]
  %v19 = vld [vmem:[%s1 + $0x10] sm:$0xff]
  %v20 = vld [vmem:[%s1 + $0x18] sm:$0xff]
  %v21 = vld [vmem:[%s1 + $0x20] sm:$0xff]
  %v22 = vld [vmem:[%s1 + $0x28] sm:$0xff]
  %v23 = vld [vmem:[%s1 + $0x30] sm:$0xff]
  %v24 = vld [vmem:[%s1 + $0x38] sm:$0xff]
  %v25 = vld [vmem:[%s1 + $0x40] sm:$0xff]
  %v26 = vld [vmem:[%s1 + $0x48] sm:$0xff]
  %v27 = vld [vmem:[%s1 + $0x50] sm:$0xff]
  %v28 = vld [vmem:[%s1 + $0x58] sm:$0xff]
  %v29 = vld [vmem:[%s1 + $0x60] sm:$0xff]
  %v30 = vld [vmem:[%s1 + $0x68] sm:$0xff]
  %v31 = vld [vmem:[%s1 + $0x70] sm:$0xff]
  %v32 = vld [vmem:[%s1 + $0x78] sm:$0xff]
  %v33 = vld [vmem:[%s1 + $0x80] sm:$0xff]
  %v34 = vld [vmem:[%s1 + $0x88] sm:$0xff]
  %v35 = vld [vmem:[%s1 + $0x90] sm:$0xff]
  %v36 = vld [vmem:[%s1 + $0x98] sm:$0xff]
  %v37 = vld [vmem:[%s1 + $0xa0] sm:$0xff]
  %v38 = vld [vmem:[%s1 + $0xa8] sm:$0xff]
  %v39 = vld [vmem:[%s1 + $0xb0] sm:$0xff]
  %v40 = vld [vmem:[%s1 + $0xb8] sm:$0xff]
  %v41 = vld [vmem:[%s1 + $0xc0] sm:$0xff]
  %v42 = vld [vmem:[%s1 + $0xc8] sm:$0xff]
  %v43 = vld [vmem:[%s1 + $0xd0] sm:$0xff]
  %v44 = vld [vmem:[%s1 + $0xd8] sm:$0xff]
  %v45 = vld [vmem:[%s1 + $0xe0] sm:$0xff]
  %v46 = vld [vmem:[%s1 + $0xe8] sm:$0xff]
  %v47 = vld [vmem:[%s1 + $0xf0] sm:$0xff]
  %v48 = vld [vmem:[%s1 + $0xf8] sm:$0xff]
  %v49 = vld [vmem:[%s1 + $0x100] sm:$0xff]
  %v50 = vld [vmem:[%s1 + $0x108] sm:$0xff]
  %v51 = vld [vmem:[%s1 + $0x110] sm:$0xff]
  %v52 = vld [vmem:[%s1 + $0x118] sm:$0xff]
  %v53 = vld [vmem:[%s1 + $0x120] sm:$0xff]
  %v54 = vld [vmem:[%s1 + $0x128] sm:$0xff]
  %v55 = vld [vmem:[%s1 + $0x130] sm:$0xff]
  %v56 = vld [vmem:[%s1 + $0x138] sm:$0xff]
  %v57 = vld [vmem:[%s1 + $0x140] sm:$0xff]
  %v58 = vld [vmem:[%s1 + $0x148] sm:$0xff]
  %v59 = vld [vmem:[%s1 + $0x150] sm:$0xff]
  %v60 = vld [vmem:[%s1 + $0x158] sm:$0xff]
  %v61 = vld [vmem:[%s1 + $0x160] sm:$0xff]
  %v62 = vld [vmem:[%s1 + $0x168] sm:$0xff]
  %v63 = vld [vmem:[%s1 + $0x170] sm:$0xff]
  %v64 = vld [vmem:[%s1 + $0x178] sm:$0xff]
  %v65 = vld [vmem:[%s1 + $0x180] sm:$0xff]
  %v66 = vld [vmem:[%s1 + $0x188] sm:$0xff]
  %v67 = vld [vmem:[%s1 + $0x190] sm:$0xff]
  %v68 = vld [vmem:[%s1 + $0x198] sm:$0xff]
  %v69 = vld [vmem:[%s1 + $0x1a0] sm:$0xff]
  %v70 = vld [vmem:[%s1 + $0x1a8] sm:$0xff]
  %v71 = vld [vmem:[%s1 + $0x1b0] sm:$0xff]
  %v72 = vld [vmem:[%s1 + $0x1b8] sm:$0xff]
  %v73 = vld [vmem:[%s1 + $0x1c0] sm:$0xff]
  %v74 = vld [vmem:[%s1 + $0x1c8] sm:$0xff]
  %v75 = vld [vmem:[%s1 + $0x1d0] sm:$0xff]
  %v76 = vld [vmem:[%s1 + $0x1d8] sm:$0xff]
  %v77 = vld [vmem:[%s1 + $0x1e0] sm:$0xff]
  %v78 = vld [vmem:[%s1 + $0x1e8] sm:$0xff]
  %v79 = vld [vmem:[%s1 + $0x1f0] sm:$0xff]
  %v80 = vld [vmem:[%s1 + $0x1f8] sm:$0xff]
  %v81 = vld [vmem:[%s1 + $0x200] sm:$0xff]
  %v82 = vld [vmem:[%s1 + $0x208] sm:$0xff]
  %v83 = vld [vmem:[%s1 + $0x210] sm:$0xff]
  %v84 = vld [vmem:[%s1 + $0x218] sm:$0xff]
  %v85 = vld [vmem:[%s1 + $0x220] sm:$0xff]
  %v86 = vld [vmem:[%s1 + $0x228] sm:$0xff]
  %v87 = vld [vmem:[%s1 + $0x230] sm:$0xff]
  %v88 = vld [vmem:[%s1 + $0x238] sm:$0xff]
  %v89 = vld [vmem:[%s1 + $0x240] sm:$0xff]
  %v90 = vld [vmem:[%s1 + $0x248] sm:$0xff]
  %v91 = vld [vmem:[%s1 + $0x250] sm:$0xff]
  %v92 = vld [vmem:[%s1 + $0x258] sm:$0xff]
  %v93 = vld [vmem:[%s1 + $0x260] sm:$0xff]
  %v94 = vld [vmem:[%s1 + $0x268] sm:$0xff]
  %v95 = vld [vmem:[%s1 + $0x270] sm:$0xff]
  %v96 = vld [vmem:[%s1 + $0x278] sm:$0xff]
  %v97 = vld [vmem:[%s1 + $0x280] sm:$0xff]
  %v98 = vld [vmem:[%s1 + $0x288] sm:$0xff]
  %v99 = vld [vmem:[%s1 + $0x290] sm:$0xff]
  %v100 = vld [vmem:[%s1 + $0x298] sm:$0xff]
  %v101 = vld [vmem:[%s1 + $0x2a0] sm:$0xff]
  %v102 = vld [vmem:[%s1 + $0x2a8] sm:$0xff]
  %v103 = vld [vmem:[%s1 + $0x2b0] sm:$0xff]
  %v104 = vld [vmem:[%s1 + $0x2b8] sm:$0xff]
  %v105 = vld [vmem:[%s1 + $0x2c0] sm:$0xff]
  %v106 = vld [vmem:[%s1 + $0x2c8] sm:$0xff]
  %v107 = vld [vmem:[%s1 + $0x2d0] sm:$0xff]
  %v108 = vld [vmem:[%s1 + $0x2d8] sm:$0xff]
  %v109 = vld [vmem:[%s1 + $0x2e0] sm:$0xff]
  %v110 = vld [vmem:[%s1 + $0x2e8] sm:$0xff]
  %v111 = vld [vmem:[%s1 + $0x2f0] sm:$0xff]
  %v112 = vld [vmem:[%s1 + $0x2f8] sm:$0xff]
  %v113 = vld [vmem:[%s1 + $0x300] sm:$0xff]
  %v114 = vld [vmem:[%s1 + $0x308] sm:$0xff]
  %v115 = vld [vmem:[%s1 + $0x310] sm:$0xff]
  %v116 = vld [vmem:[%s1 + $0x318] sm:$0xff]
  %v117 = vld [vmem:[%s2] sm:$0xff]
  %119 = vset.pattern.permute.xlu0 0
  %120 = vperm.xlu0 %119, %v117
  %v121 = vpop.permute.xlu0 %120
  %v125 = vunpack.c.l.b16 %v15
  %v126 = vunpack.c.h.b16 %v15
  %v127 = vunpack.c.l.b16 %v16
  %v128 = vunpack.c.h.b16 %v16
  %v129 = vpack.c.b16 %v125, %v125
  %v130 = vpack.c.b16 %v126, %v126
  %v131 = vpack.c.b16 %v127, %v127
  %v132 = vpack.c.b16 %v128, %v128
  %v236 = vunpack.c.l.b16 %v17
  %v237 = vunpack.c.h.b16 %v17
  %v238 = vunpack.c.l.b16 %v18
  %v239 = vunpack.c.h.b16 %v18
  %v240 = vunpack.c.l.b16 %v19
  %v241 = vunpack.c.h.b16 %v19
  %v242 = vunpack.c.l.b16 %v20
  %v243 = vunpack.c.h.b16 %v20
  %v244 = vunpack.c.l.b16 %v21
  %v245 = vunpack.c.h.b16 %v21
  %v246 = vunpack.c.l.b16 %v22
  %v247 = vunpack.c.h.b16 %v22
  %v248 = vunpack.c.l.b16 %v23
  %v249 = vunpack.c.h.b16 %v23
  %v250 = vunpack.c.l.b16 %v24
  %v251 = vunpack.c.h.b16 %v24
  %v252 = vunpack.c.l.b16 %v25
  %v253 = vunpack.c.h.b16 %v25
  %v254 = vunpack.c.l.b16 %v26
  %v255 = vunpack.c.h.b16 %v26
  %v256 = vunpack.c.l.b16 %v27
  %v257 = vunpack.c.h.b16 %v27
  %v258 = vunpack.c.l.b16 %v28
  %v259 = vunpack.c.h.b16 %v28
  %v260 = vunpack.c.l.b16 %v29
  %v261 = vunpack.c.h.b16 %v29
  %v262 = vunpack.c.l.b16 %v30
  %v263 = vunpack.c.h.b16 %v30
  %v264 = vunpack.c.l.b16 %v31
  %v265 = vunpack.c.h.b16 %v31
  %v266 = vunpack.c.l.b16 %v32
  %v267 = vunpack.c.h.b16 %v32
  %v268 = vunpack.c.l.b16 %v33
  %v269 = vunpack.c.h.b16 %v33
  %v270 = vunpack.c.l.b16 %v34
  %v271 = vunpack.c.h.b16 %v34
  %v272 = vunpack.c.l.b16 %v35
  %v273 = vunpack.c.h.b16 %v35
  %v274 = vunpack.c.l.b16 %v36
  %v275 = vunpack.c.h.b16 %v36
  %v276 = vunpack.c.l.b16 %v37
  %v277 = vunpack.c.h.b16 %v37
  %v278 = vunpack.c.l.b16 %v38
  %v279 = vunpack.c.h.b16 %v38
  %v280 = vunpack.c.l.b16 %v39
  %v281 = vunpack.c.h.b16 %v39
  %v282 = vunpack.c.l.b16 %v40
  %v283 = vunpack.c.h.b16 %v40
  %v284 = vunpack.c.l.b16 %v41
  %v285 = vunpack.c.h.b16 %v41
  %v286 = vunpack.c.l.b16 %v42
  %v287 = vunpack.c.h.b16 %v42
  %v288 = vunpack.c.l.b16 %v43
  %v289 = vunpack.c.h.b16 %v43
  %v290 = vunpack.c.l.b16 %v44
  %v291 = vunpack.c.h.b16 %v44
  %v292 = vunpack.c.l.b16 %v45
  %v293 = vunpack.c.h.b16 %v45
  %v294 = vunpack.c.l.b16 %v46
  %v295 = vunpack.c.h.b16 %v46
  %v296 = vunpack.c.l.b16 %v47
  %v297 = vunpack.c.h.b16 %v47
  %v298 = vunpack.c.l.b16 %v48
  %v299 = vunpack.c.h.b16 %v48
  %v300 = vunpack.c.l.b16 %v49
  %v301 = vunpack.c.h.b16 %v49
  %v302 = vunpack.c.l.b16 %v50
  %v303 = vunpack.c.h.b16 %v50
  %v304 = vunpack.c.l.b16 %v51
  %v305 = vunpack.c.h.b16 %v51
  %v306 = vunpack.c.l.b16 %v52
  %v307 = vunpack.c.h.b16 %v52
  %v308 = vunpack.c.l.b16 %v53
  %v309 = vunpack.c.h.b16 %v53
  %v310 = vunpack.c.l.b16 %v54
  %v311 = vunpack.c.h.b16 %v54
  %v312 = vunpack.c.l.b16 %v55
  %v313 = vunpack.c.h.b16 %v55
  %v314 = vunpack.c.l.b16 %v56
  %v315 = vunpack.c.h.b16 %v56
  %v316 = vunpack.c.l.b16 %v57
  %v317 = vunpack.c.h.b16 %v57
  %v318 = vunpack.c.l.b16 %v58
  %v319 = vunpack.c.h.b16 %v58
  %v320 = vunpack.c.l.b16 %v59
  %v321 = vunpack.c.h.b16 %v59
  %v322 = vunpack.c.l.b16 %v60
  %v323 = vunpack.c.h.b16 %v60
  %v324 = vunpack.c.l.b16 %v61
  %v325 = vunpack.c.h.b16 %v61
  %v326 = vunpack.c.l.b16 %v62
  %v327 = vunpack.c.h.b16 %v62
  %v328 = vunpack.c.l.b16 %v63
  %v329 = vunpack.c.h.b16 %v63
  %v330 = vunpack.c.l.b16 %v64
  %v331 = vunpack.c.h.b16 %v64
  %v332 = vunpack.c.l.b16 %v65
  %v333 = vunpack.c.h.b16 %v65
  %v334 = vunpack.c.l.b16 %v66
  %v335 = vunpack.c.h.b16 %v66
  %v336 = vunpack.c.l.b16 %v67
  %v337 = vunpack.c.h.b16 %v67
  %v338 = vunpack.c.l.b16 %v68
  %v339 = vunpack.c.h.b16 %v68
  %v340 = vunpack.c.l.b16 %v69
  %v341 = vunpack.c.h.b16 %v69
  %v342 = vunpack.c.l.b16 %v70
  %v343 = vunpack.c.h.b16 %v70
  %v344 = vunpack.c.l.b16 %v71
  %v345 = vunpack.c.h.b16 %v71
  %v346 = vunpack.c.l.b16 %v72
  %v347 = vunpack.c.h.b16 %v72
  %v348 = vunpack.c.l.b16 %v73
  %v349 = vunpack.c.h.b16 %v73
  %v350 = vunpack.c.l.b16 %v74
  %v351 = vunpack.c.h.b16 %v74
  %v352 = vunpack.c.l.b16 %v75
  %v353 = vunpack.c.h.b16 %v75
  %v354 = vunpack.c.l.b16 %v76
  %v355 = vunpack.c.h.b16 %v76
  %v356 = vunpack.c.l.b16 %v77
  %v357 = vunpack.c.h.b16 %v77
  %v358 = vunpack.c.l.b16 %v78
  %v359 = vunpack.c.h.b16 %v78
  %v360 = vunpack.c.l.b16 %v79
  %v361 = vunpack.c.h.b16 %v79
  %v362 = vunpack.c.l.b16 %v80
  %v363 = vunpack.c.h.b16 %v80
  %v364 = vunpack.c.l.b16 %v81
  %v365 = vunpack.c.h.b16 %v81
  %v366 = vunpack.c.l.b16 %v82
  %v367 = vunpack.c.h.b16 %v82
  %v368 = vunpack.c.l.b16 %v83
  %v369 = vunpack.c.h.b16 %v83
  %v370 = vunpack.c.l.b16 %v84
  %v371 = vunpack.c.h.b16 %v84
  %v372 = vunpack.c.l.b16 %v85
  %v373 = vunpack.c.h.b16 %v85
  %v374 = vunpack.c.l.b16 %v86
  %v375 = vunpack.c.h.b16 %v86
  %v376 = vunpack.c.l.b16 %v87
  %v377 = vunpack.c.h.b16 %v87
  %v378 = vunpack.c.l.b16 %v88
  %v379 = vunpack.c.h.b16 %v88
  %v380 = vunpack.c.l.b16 %v89
  %v381 = vunpack.c.h.b16 %v89
  %v382 = vunpack.c.l.b16 %v90
  %v383 = vunpack.c.h.b16 %v90
  %v384 = vunpack.c.l.b16 %v91
  %v385 = vunpack.c.h.b16 %v91
  %v386 = vunpack.c.l.b16 %v92
  %v387 = vunpack.c.h.b16 %v92
  %v388 = vunpack.c.l.b16 %v93
  %v389 = vunpack.c.h.b16 %v93
  %v390 = vunpack.c.l.b16 %v94
  %v391 = vunpack.c.h.b16 %v94
  %v392 = vunpack.c.l.b16 %v95
  %v393 = vunpack.c.h.b16 %v95
  %v394 = vunpack.c.l.b16 %v96
  %v395 = vunpack.c.h.b16 %v96
  %v396 = vunpack.c.l.b16 %v97
  %v397 = vunpack.c.h.b16 %v97
  %v398 = vunpack.c.l.b16 %v98
  %v399 = vunpack.c.h.b16 %v98
  %v400 = vunpack.c.l.b16 %v99
  %v401 = vunpack.c.h.b16 %v99
  %v402 = vunpack.c.l.b16 %v100
  %v403 = vunpack.c.h.b16 %v100
  %v404 = vunpack.c.l.b16 %v101
  %v405 = vunpack.c.h.b16 %v101
  %v406 = vunpack.c.l.b16 %v102
  %v407 = vunpack.c.h.b16 %v102
  %v408 = vunpack.c.l.b16 %v103
  %v409 = vunpack.c.h.b16 %v103
  %v410 = vunpack.c.l.b16 %v104
  %v411 = vunpack.c.h.b16 %v104
  %v412 = vunpack.c.l.b16 %v105
  %v413 = vunpack.c.h.b16 %v105
  %v414 = vunpack.c.l.b16 %v106
  %v415 = vunpack.c.h.b16 %v106
  %v416 = vunpack.c.l.b16 %v107
  %v417 = vunpack.c.h.b16 %v107
  %v418 = vunpack.c.l.b16 %v108
  %v419 = vunpack.c.h.b16 %v108
  %v420 = vunpack.c.l.b16 %v109
  %v421 = vunpack.c.h.b16 %v109
  %v422 = vunpack.c.l.b16 %v110
  %v423 = vunpack.c.h.b16 %v110
  %v424 = vunpack.c.l.b16 %v111
  %v425 = vunpack.c.h.b16 %v111
  %v426 = vunpack.c.l.b16 %v112
  %v427 = vunpack.c.h.b16 %v112
  %v428 = vunpack.c.l.b16 %v113
  %v429 = vunpack.c.h.b16 %v113
  %v430 = vunpack.c.l.b16 %v114
  %v431 = vunpack.c.h.b16 %v114
  %v432 = vunpack.c.l.b16 %v115
  %v433 = vunpack.c.h.b16 %v115
  %v434 = vunpack.c.l.b16 %v116
  %v435 = vunpack.c.h.b16 %v116
  %v436 = vpack.c.b16 %v240, %v236
  %v437 = vpack.c.b16 %v241, %v237
  %v438 = vpack.c.b16 %v242, %v238
  %v439 = vpack.c.b16 %v243, %v239
  %v440 = vpack.c.b16 %v248, %v244
  %v441 = vpack.c.b16 %v249, %v245
  %v442 = vpack.c.b16 %v250, %v246
  %v443 = vpack.c.b16 %v251, %v247
  %v444 = vpack.c.b16 %v256, %v252
  %v445 = vpack.c.b16 %v257, %v253
  %v446 = vpack.c.b16 %v258, %v254
  %v447 = vpack.c.b16 %v259, %v255
  %v448 = vpack.c.b16 %v264, %v260
  %v449 = vpack.c.b16 %v265, %v261
  %v450 = vpack.c.b16 %v266, %v262
  %v451 = vpack.c.b16 %v267, %v263
  %v452 = vpack.c.b16 %v272, %v268
  %v453 = vpack.c.b16 %v273, %v269
  %v454 = vpack.c.b16 %v274, %v270
  %v455 = vpack.c.b16 %v275, %v271
  %v456 = vpack.c.b16 %v280, %v276
  %v457 = vpack.c.b16 %v281, %v277
  %v458 = vpack.c.b16 %v282, %v278
  %v459 = vpack.c.b16 %v283, %v279
  %v460 = vpack.c.b16 %v288, %v284
  %v461 = vpack.c.b16 %v289, %v285
  %v462 = vpack.c.b16 %v290, %v286
  %v463 = vpack.c.b16 %v291, %v287
  %v464 = vpack.c.b16 %v296, %v292
  %v465 = vpack.c.b16 %v297, %v293
  %v466 = vpack.c.b16 %v298, %v294
  %v467 = vpack.c.b16 %v299, %v295
  %v468 = vpack.c.b16 %v304, %v300
  %v469 = vpack.c.b16 %v305, %v301
  %v470 = vpack.c.b16 %v306, %v302
  %v471 = vpack.c.b16 %v307, %v303
  %v472 = vpack.c.b16 %v312, %v308
  %v473 = vpack.c.b16 %v313, %v309
  %v474 = vpack.c.b16 %v314, %v310
  %v475 = vpack.c.b16 %v315, %v311
  %v476 = vpack.c.b16 %v320, %v316
  %v477 = vpack.c.b16 %v321, %v317
  %v478 = vpack.c.b16 %v322, %v318
  %v479 = vpack.c.b16 %v323, %v319
  %v480 = vpack.c.b16 %v328, %v324
  %v481 = vpack.c.b16 %v329, %v325
  %v482 = vpack.c.b16 %v330, %v326
  %v483 = vpack.c.b16 %v331, %v327
  %v484 = vpack.c.b16 %v336, %v332
  %v485 = vpack.c.b16 %v337, %v333
  %v486 = vpack.c.b16 %v338, %v334
  %v487 = vpack.c.b16 %v339, %v335
  %v488 = vpack.c.b16 %v344, %v340
  %v489 = vpack.c.b16 %v345, %v341
  %v490 = vpack.c.b16 %v346, %v342
  %v491 = vpack.c.b16 %v347, %v343
  %v492 = vpack.c.b16 %v352, %v348
  %v493 = vpack.c.b16 %v353, %v349
  %v494 = vpack.c.b16 %v354, %v350
  %v495 = vpack.c.b16 %v355, %v351
  %v496 = vpack.c.b16 %v360, %v356
  %v497 = vpack.c.b16 %v361, %v357
  %v498 = vpack.c.b16 %v362, %v358
  %v499 = vpack.c.b16 %v363, %v359
  %v500 = vpack.c.b16 %v368, %v364
  %v501 = vpack.c.b16 %v369, %v365
  %v502 = vpack.c.b16 %v370, %v366
  %v503 = vpack.c.b16 %v371, %v367
  %v504 = vpack.c.b16 %v376, %v372
  %v505 = vpack.c.b16 %v377, %v373
  %v506 = vpack.c.b16 %v378, %v374
  %v507 = vpack.c.b16 %v379, %v375
  %v508 = vpack.c.b16 %v384, %v380
  %v509 = vpack.c.b16 %v385, %v381
  %v510 = vpack.c.b16 %v386, %v382
  %v511 = vpack.c.b16 %v387, %v383
  %v512 = vpack.c.b16 %v392, %v388
  %v513 = vpack.c.b16 %v393, %v389
  %v514 = vpack.c.b16 %v394, %v390
  %v515 = vpack.c.b16 %v395, %v391
  %v516 = vpack.c.b16 %v400, %v396
  %v517 = vpack.c.b16 %v401, %v397
  %v518 = vpack.c.b16 %v402, %v398
  %v519 = vpack.c.b16 %v403, %v399
  %v520 = vpack.c.b16 %v408, %v404
  %v521 = vpack.c.b16 %v409, %v405
  %v522 = vpack.c.b16 %v410, %v406
  %v523 = vpack.c.b16 %v411, %v407
  %v524 = vpack.c.b16 %v416, %v412
  %v525 = vpack.c.b16 %v417, %v413
  %v526 = vpack.c.b16 %v418, %v414
  %v527 = vpack.c.b16 %v419, %v415
  %v528 = vpack.c.b16 %v424, %v420
  %v529 = vpack.c.b16 %v425, %v421
  %v530 = vpack.c.b16 %v426, %v422
  %v531 = vpack.c.b16 %v427, %v423
  %v532 = vpack.c.b16 %v432, %v428
  %v533 = vpack.c.b16 %v433, %v429
  %v534 = vpack.c.b16 %v434, %v430
  %v535 = vpack.c.b16 %v435, %v431
  %vm636 = vcmask 130048
  %v638 = vsel %vm636, %v132, 0
  %640 = vmatprep.subr.bf16.mxu0 %v437
  %641 = vmatpush1.bf16.msra.mxu0 %v436
  %642 = vmatprep.subr.bf16.mxu0 %v441
  %643 = vmatpush1.bf16.msra.mxu0 %v440
  %644 = vmatprep.subr.bf16.mxu0 %v445
  %645 = vmatpush1.bf16.msra.mxu0 %v444
  %646 = vmatprep.subr.bf16.mxu0 %v449
  %647 = vmatpush1.bf16.msra.mxu0 %v448
  %648 = vmatprep.subr.bf16.mxu0 %v453
  %649 = vmatpush1.bf16.msra.mxu0 %v452
  %650 = vmatprep.subr.bf16.mxu0 %v457
  %651 = vmatpush1.bf16.msra.mxu0 %v456
  %652 = vmatprep.subr.bf16.mxu0 %v461
  %653 = vmatpush1.bf16.msra.mxu0 %v460
  %654 = vmatprep.subr.bf16.mxu0 %v465
  %655 = vmatpush1.bf16.msra.mxu0 %v464
  %656 = vmatprep.subr.bf16.mxu0 %v469
  %657 = vmatpush1.bf16.msra.mxu0 %v468
  %658 = vmatprep.subr.bf16.mxu0 %v473
  %659 = vmatpush1.bf16.msra.mxu0 %v472
  %660 = vmatprep.subr.bf16.mxu0 %v477
  %661 = vmatpush1.bf16.msra.mxu0 %v476
  %662 = vmatprep.subr.bf16.mxu0 %v481
  %663 = vmatpush1.bf16.msra.mxu0 %v480
  %664 = vmatprep.subr.bf16.mxu0 %v485
  %665 = vmatpush1.bf16.msra.mxu0 %v484
  %666 = vmatprep.subr.bf16.mxu0 %v489
  %667 = vmatpush1.bf16.msra.mxu0 %v488
  %668 = vmatprep.subr.bf16.mxu0 %v493
  %669 = vmatpush1.bf16.msra.mxu0 %v492
  %670 = vmatprep.subr.bf16.mxu0 %v497
  %671 = vmatpush1.bf16.msra.mxu0 %v496
  %672 = vmatprep.mubr.bf16.mxu0 %v130
  %673 = vmatmul.mubr.bf16.gmra.mrb[0].mxu0 %v129
  %v674 = vpop.f32.mrb[0].mxu0
  %v675 = vadd.f32 %v121, %v674
  %v676 = vpop.f32.mrb[0].mxu0
  %v677 = vadd.f32 %v121, %v676
  %v678 = vpop.f32.mrb[0].mxu0
  %v679 = vpop.f32.mrb[0].mxu0
  %680 = vdwg.mxu0
  %681 = vmatprep.subr.bf16.mxu0 %v501
  %682 = vmatpush1.bf16.msra.mxu0 %v500
  %683 = vmatprep.subr.bf16.mxu0 %v505
  %684 = vmatpush1.bf16.msra.mxu0 %v504
  %685 = vmatprep.subr.bf16.mxu0 %v509
  %686 = vmatpush1.bf16.msra.mxu0 %v508
  %687 = vmatprep.subr.bf16.mxu0 %v513
  %688 = vmatpush1.bf16.msra.mxu0 %v512
  %689 = vmatprep.subr.bf16.mxu0 %v517
  %690 = vmatpush1.bf16.msra.mxu0 %v516
  %691 = vmatprep.subr.bf16.mxu0 %v521
  %692 = vmatpush1.bf16.msra.mxu0 %v520
  %693 = vmatprep.subr.bf16.mxu0 %v525
  %694 = vmatpush1.bf16.msra.mxu0 %v524
  %695 = vmatprep.subr.bf16.mxu0 %v529
  %696 = vmatpush1.bf16.msra.mxu0 %v528
  %697 = vmatprep.subr.bf16.mxu0 %v533
  %698 = vmatpush1.bf16.msra.mxu0 %v532
  %699 = vmatprep.subr.bf16.mxu0 0
  %700 = vmatpush1.bf16.msra.mxu0 0
  %701 = vmatprep.subr.bf16.mxu0 0
  %702 = vmatpush1.bf16.msra.mxu0 0
  %703 = vmatprep.subr.bf16.mxu0 0
  %704 = vmatpush1.bf16.msra.mxu0 0
  %705 = vmatprep.subr.bf16.mxu0 0
  %706 = vmatpush1.bf16.msra.mxu0 0
  %707 = vmatprep.subr.bf16.mxu0 0
  %708 = vmatpush1.bf16.msra.mxu0 0
  %709 = vmatprep.subr.bf16.mxu0 0
  %710 = vmatpush1.bf16.msra.mxu0 0
  %711 = vmatprep.subr.bf16.mxu0 0
  %712 = vmatpush1.bf16.msra.mxu0 0
  %713 = vmatprep.mubr.bf16.mxu0 %v638
  %714 = vmatmul.mubr.bf16.gmra.mrb[0].mxu0 %v131
  %v715 = vpop.f32.mrb[0].mxu0
  %v716 = vadd.f32 %v675, %v715
  %v717 = vpop.f32.mrb[0].mxu0
  %v718 = vadd.f32 %v677, %v717
  %v719 = vpop.f32.mrb[0].mxu0
  %v720 = vpop.f32.mrb[0].mxu0
  %721 = vdwg.mxu0
  %722 = vmatprep.subr.bf16.mxu0 %v439
  %723 = vmatpush1.bf16.msra.mxu0 %v438
  %724 = vmatprep.subr.bf16.mxu0 %v443
  %725 = vmatpush1.bf16.msra.mxu0 %v442
  %726 = vmatprep.subr.bf16.mxu0 %v447
  %727 = vmatpush1.bf16.msra.mxu0 %v446
  %728 = vmatprep.subr.bf16.mxu0 %v451
  %729 = vmatpush1.bf16.msra.mxu0 %v450
  %730 = vmatprep.subr.bf16.mxu0 %v455
  %731 = vmatpush1.bf16.msra.mxu0 %v454
  %732 = vmatprep.subr.bf16.mxu0 %v459
  %733 = vmatpush1.bf16.msra.mxu0 %v458
  %734 = vmatprep.subr.bf16.mxu0 %v463
  %735 = vmatpush1.bf16.msra.mxu0 %v462
  %736 = vmatprep.subr.bf16.mxu0 %v467
  %737 = vmatpush1.bf16.msra.mxu0 %v466
  %738 = vmatprep.subr.bf16.mxu0 %v471
  %739 = vmatpush1.bf16.msra.mxu0 %v470
  %740 = vmatprep.subr.bf16.mxu0 %v475
  %741 = vmatpush1.bf16.msra.mxu0 %v474
  %742 = vmatprep.subr.bf16.mxu0 %v479
  %743 = vmatpush1.bf16.msra.mxu0 %v478
  %744 = vmatprep.subr.bf16.mxu0 %v483
  %745 = vmatpush1.bf16.msra.mxu0 %v482
  %746 = vmatprep.subr.bf16.mxu0 %v487
  %747 = vmatpush1.bf16.msra.mxu0 %v486
  %748 = vmatprep.subr.bf16.mxu0 %v491
  %749 = vmatpush1.bf16.msra.mxu0 %v490
  %750 = vmatprep.subr.bf16.mxu0 %v495
  %751 = vmatpush1.bf16.msra.mxu0 %v494
  %752 = vmatprep.subr.bf16.mxu0 %v499
  %753 = vmatpush1.bf16.msra.mxu0 %v498
  %754 = vmatprep.mubr.bf16.mxu0 %v130
  %755 = vmatmul.mubr.bf16.gmra.mrb[0].mxu0 %v129
  %v756 = vpop.f32.mrb[0].mxu0
  %v757 = vadd.f32 %v121, %v756
  %v758 = vpop.f32.mrb[0].mxu0
  %v759 = vadd.f32 %v121, %v758
  %v760 = vpop.f32.mrb[0].mxu0
  %v761 = vpop.f32.mrb[0].mxu0
  %762 = vdwg.mxu0
  %763 = vmatprep.subr.bf16.mxu0 %v503
  %764 = vmatpush1.bf16.msra.mxu0 %v502
  %765 = vmatprep.subr.bf16.mxu0 %v507
  %766 = vmatpush1.bf16.msra.mxu0 %v506
  %767 = vmatprep.subr.bf16.mxu0 %v511
  %768 = vmatpush1.bf16.msra.mxu0 %v510
  %769 = vmatprep.subr.bf16.mxu0 %v515
  %770 = vmatpush1.bf16.msra.mxu0 %v514
  %771 = vmatprep.subr.bf16.mxu0 %v519
  %772 = vmatpush1.bf16.msra.mxu0 %v518
  %773 = vmatprep.subr.bf16.mxu0 %v523
  %774 = vmatpush1.bf16.msra.mxu0 %v522
  %775 = vmatprep.subr.bf16.mxu0 %v527
  %776 = vmatpush1.bf16.msra.mxu0 %v526
  %777 = vmatprep.subr.bf16.mxu0 %v531
  %778 = vmatpush1.bf16.msra.mxu0 %v530
  %779 = vmatprep.subr.bf16.mxu0 %v535
  %780 = vmatpush1.bf16.msra.mxu0 %v534
  %781 = vmatprep.subr.bf16.mxu0 0
  %782 = vmatpush1.bf16.msra.mxu0 0
  %783 = vmatprep.subr.bf16.mxu0 0
  %784 = vmatpush1.bf16.msra.mxu0 0
  %785 = vmatprep.subr.bf16.mxu0 0
  %786 = vmatpush1.bf16.msra.mxu0 0
  %787 = vmatprep.subr.bf16.mxu0 0
  %788 = vmatpush1.bf16.msra.mxu0 0
  %789 = vmatprep.subr.bf16.mxu0 0
  %790 = vmatpush1.bf16.msra.mxu0 0
  %791 = vmatprep.subr.bf16.mxu0 0
  %792 = vmatpush1.bf16.msra.mxu0 0
  %793 = vmatprep.subr.bf16.mxu0 0
  %794 = vmatpush1.bf16.msra.mxu0 0
  %795 = vmatprep.mubr.bf16.mxu0 %v638
  %796 = vmatmul.mubr.bf16.gmra.mrb[0].mxu0 %v131
  %v797 = vpop.f32.mrb[0].mxu0
  %v798 = vadd.f32 %v757, %v797
  %v799 = vpop.f32.mrb[0].mxu0
  %v800 = vadd.f32 %v759, %v799
  %v801 = vpop.f32.mrb[0].mxu0
  %v802 = vpop.f32.mrb[0].mxu0
  %803 = vdwg.mxu0
  %v804 = vmax.f32 %v716, 0.0
  %v805 = vmax.f32 %v718, 0.0
  %v806 = vmax.f32 %v798, 0.0
  %v807 = vmax.f32 %v800, 0.0
  %808 = vst [vmem:[%s3] sm:$0xff] %v804
  %809 = vst [vmem:[%s3 + $0x8] sm:$0xff] %v805
  %810 = vst [vmem:[%s3 + $0x10] sm:$0xff] %v806
  %vm811 = vcmask 539648
  %812 = vst.msk [vmem:[%s3 + $0x18] sm:$0xff] %vm811, %v807
  // Predicated region
  $region14: #{conv_autoencoder_forward.12} parent=0 // pred_check
    _
  $region15: #{conv_autoencoder_forward.12} parent=0 // pred_check_branch
    %814 = sbr.rel (0) target = $region17
  $region16: #{conv_autoencoder_forward.12} parent=0 // pred_region
    _
  $region17: #{conv_autoencoder_forward.12} parent=0 // pred_fallthru
    _
  // Predicated region
  $region18: #{conv_autoencoder_forward.12} parent=0 // pred_check
    _
  $region19: #{conv_autoencoder_forward.12} parent=0 // pred_check_branch
    %816 = sbr.rel (0) target = $region21
  $region20: #{conv_autoencoder_forward.12} parent=0 // pred_region
    _
  $region21: #{conv_autoencoder_forward.12} parent=0 // pred_fallthru
    _

// kernel: conv_autoencoder_forward.13
$region0: #{conv_autoencoder_forward.13}
  #allocation0 [shape = 'u32[]', space=smem, size = 0x4, offset = 0x4, fixed_abs, tag = 'smem constant byte address 0x4 - core index']
  #allocation1 [shape = 'u32[144,128]{1,0:T(1,128)}', space=vmem, size = 0x12000, scoped, tag = 'internal scratch']
  #allocation2 [shape = 'f32[1,1]{1,0:T(1,128)S(1)}', space=vmem, size = 0x200, scoped, tag = 'scoped memory for conv_autoencoder_forward.13']
  %s0 = inlined_call_operand.vmem [shape: bf16[1,32], index: 0, kind: input, shape index: {}]
  %s1 = inlined_call_operand.vmem [shape: bf16[32,1568], index: 1, kind: input, shape index: {}]
  %s2 = inlined_call_operand.<no memory space> [shape: f32[1,1], index: 2, kind: input, shape index: {}]
  %s3 = inlined_call_operand.vmem [shape: f32[1,1568], index: 3, kind: output, shape index: {}]
  %s4 = sld [smem:[#allocation0]]
  $region173: #{conv_autoencoder_forward.13} parent=0
    _
  %s6 = ssub.s32 1, %s4
  %s7 = scalar_select 0, %s6, %s4
  %v8 = vstv %s2
  %9 = vst [vmem:[#allocation2] sm:$0x1] %v8
  $region1: #{conv_autoencoder_forward.13} parent=0
    #allocation3 [shape = 'u8[65536]{0}', space=vmem, size = 0x10000, scoped, tag = 'input window, operand 1']
    #allocation4 [shape = 'u8[4096]{0}', space=vmem, size = 0x1000, scoped, tag = 'output window, operand 0']
    loop: start=0, step=1, limit=6
    $region2: #{conv_autoencoder_forward.13} parent=1 // loop_pre_header
      _
    $region3: #{conv_autoencoder_forward.13} parent=1 // loop_header
      %s11 = sphi 0, %s15
      %p12 = scmp.ge.s32.totalorder %s11, 6
      %s19 = sphi 0, %s19
      %s21 = sphi 0, %s19
      %s22 = sphi 0, %s21
      %s36 = sphi 0, %s22
      %s42 = sphi 0, %s44
      %s45 = sphi 0, %s42
      %s46 = sphi 0, %s45
      %s62 = sphi 0, %s46
      %s66 = sphi 0, %s66
      %s68 = sphi 0, %s66
      %s69 = sphi 0, %s68
      %s83 = sphi 0, %s69
      %s89 = sphi 0, %s91
      %s92 = sphi 0, %s89
      %s93 = sphi 0, %s92
      %s109 = sphi 0, %s93
    $region4: #{conv_autoencoder_forward.13} parent=1 // loop_header_branch
      %14 = sbr.rel (%p12) target = $region8
    $region5: #{conv_autoencoder_forward.13} parent=1 // loop_body
      %s16 = ssub.s32 %s11, 1
      %s17 = ssub.s32 %s11, 2
      %s18 = sadd.s32 %s11, 1
      %s20 = sadd.s32 %s19, 1
      %p23 = scmp.eq.s32.totalorder %s11, 3
      %p24 = scmp.ne.s32.totalorder %s19, %s21
      %p25 = scmp.eq.s32.totalorder %s11, 0
      %p26 = por %p24, %p25
      %p27 = scmp.ne.s32.totalorder %s19, %s21
      %p28 = scmp.eq.s32.totalorder %s16, 3
      %p29 = por %p27, %p28
      %p30 = scmp.ne.s32.totalorder %s21, %s22
      %p31 = scmp.eq.s32.totalorder %s16, 0
      %p32 = por %p30, %p31
      %p33 = scmp.ne.s32.totalorder %s21, %s22
      %p34 = scmp.eq.s32.totalorder %s17, 3
      %p35 = por %p33, %p34
      %p37 = scmp.ne.s32.totalorder %s22, %s36
      %p38 = scmp.eq.s32.totalorder %s17, 0
      %p39 = por %p37, %p38
      %s40 = ssub.s32 %s11, %s18
      %p41 = scmp.eq.s32.totalorder %s40, 0
      %s43 = sadd.s32 %s42, 1
      %s44 = scalar_select %p41, %s42, %s43
      %p47 = pneg %p41
      %p48 = scmp.eq.s32.totalorder %s11, 3
      %p49 = por %p47, %p48
      %p50 = scmp.ne.s32.totalorder %s42, %s45
      %p51 = scmp.eq.s32.totalorder %s11, 0
      %p52 = por %p50, %p51
      %p53 = scmp.ne.s32.totalorder %s42, %s45
      %p54 = scmp.eq.s32.totalorder %s16, 3
      %p55 = por %p53, %p54
      %p56 = scmp.ne.s32.totalorder %s45, %s46
      %p57 = scmp.eq.s32.totalorder %s16, 0
      %p58 = por %p56, %p57
      %p59 = scmp.ne.s32.totalorder %s45, %s46
      %p60 = scmp.eq.s32.totalorder %s17, 3
      %p61 = por %p59, %p60
      %p63 = scmp.ne.s32.totalorder %s46, %s62
      %p64 = scmp.eq.s32.totalorder %s17, 0
      %p65 = por %p63, %p64
      %s67 = sadd.s32 %s66, 1
      %p70 = scmp.eq.s32.totalorder %s11, 3
      %p71 = scmp.ne.s32.totalorder %s66, %s68
      %p72 = scmp.eq.s32.totalorder %s11, 0
      %p73 = por %p71, %p72
      %p74 = scmp.ne.s32.totalorder %s66, %s68
      %p75 = scmp.eq.s32.totalorder %s16, 3
      %p76 = por %p74, %p75
      %p77 = scmp.ne.s32.totalorder %s68, %s69
      %p78 = scmp.eq.s32.totalorder %s16, 0
      %p79 = por %p77, %p78
      %p80 = scmp.ne.s32.totalorder %s68, %s69
      %p81 = scmp.eq.s32.totalorder %s17, 3
      %p82 = por %p80, %p81
      %p84 = scmp.ne.s32.totalorder %s69, %s83
      %p85 = scmp.eq.s32.totalorder %s17, 0
      %p86 = por %p84, %p85
      %s87 = ssub.s32 %s11, %s18
      %p88 = scmp.eq.s32.totalorder %s87, 0
      %s90 = sadd.s32 %s89, 1
      %s91 = scalar_select %p88, %s89, %s90
      %p94 = pneg %p88
      %p95 = scmp.eq.s32.totalorder %s11, 3
      %p96 = por %p94, %p95
      %p97 = scmp.ne.s32.totalorder %s89, %s92
      %p98 = scmp.eq.s32.totalorder %s11, 0
      %p99 = por %p97, %p98
      %p100 = scmp.ne.s32.totalorder %s89, %s92
      %p101 = scmp.eq.s32.totalorder %s16, 3
      %p102 = por %p100, %p101
      %p103 = scmp.ne.s32.totalorder %s92, %s93
      %p104 = scmp.eq.s32.totalorder %s16, 0
      %p105 = por %p103, %p104
      %p106 = scmp.ne.s32.totalorder %s92, %s93
      %p107 = scmp.eq.s32.totalorder %s17, 3
      %p108 = por %p106, %p107
      %p110 = scmp.ne.s32.totalorder %s93, %s109
      %p111 = scmp.eq.s32.totalorder %s17, 0
      %p112 = por %p110, %p111
      %p113 = scmp.le.s32.totalorder 1, %s11
      %p114 = scmp.lt.s32.totalorder %s11, 5
      %p115 = pnand %p113, %p114
      %p116 = pneg %p115
      // Predicated region
      $region9: #{conv_autoencoder_forward.13} parent=5 // pred_check
        _
      $region10: #{conv_autoencoder_forward.13} parent=5 // pred_check_branch
        %118 = sbr.rel (%p115) target = $region12
      $region11: #{conv_autoencoder_forward.13} parent=5 // pred_region
        %s119 = ssub.s32 %s11, 1
        // Predicated region
        $region13: #{conv_autoencoder_forward.13} parent=11 // pred_check
          %p120 = pneg %p32
        $region14: #{conv_autoencoder_forward.13} parent=11 // pred_check_branch
          %122 = sbr.rel (%p120) target = $region16
        $region15: #{conv_autoencoder_forward.13} parent=11 // pred_region
          _
        $region16: #{conv_autoencoder_forward.13} parent=11 // pred_fallthru
          _
        // Predicated region
        $region17: #{conv_autoencoder_forward.13} parent=11 // pred_check
          %p123 = pneg %p79
        $region18: #{conv_autoencoder_forward.13} parent=11 // pred_check_branch
          %125 = sbr.rel (%p123) target = $region20
        $region19: #{conv_autoencoder_forward.13} parent=11 // pred_region
          _
        $region20: #{conv_autoencoder_forward.13} parent=11 // pred_fallthru
          _
      $region12: #{conv_autoencoder_forward.13} parent=5 // pred_fallthru
        _
      %p126 = scmp.lt.s32.totalorder %s11, 4
      // Predicated region
      $region21: #{conv_autoencoder_forward.13} parent=5 // pred_check
        %p127 = pneg %p126
      $region22: #{conv_autoencoder_forward.13} parent=5 // pred_check_branch
        %129 = sbr.rel (%p127) target = $region24
      $region23: #{conv_autoencoder_forward.13} parent=5 // pred_region
        // Predicated region
        $region25: #{conv_autoencoder_forward.13} parent=23 // pred_check
          %p130 = pneg %p52
        $region26: #{conv_autoencoder_forward.13} parent=23 // pred_check_branch
          %132 = sbr.rel (%p130) target = $region28
        $region27: #{conv_autoencoder_forward.13} parent=23 // pred_region
          %s133 = sand.u32 %s42, 1
          %s134 = sand.u32 %s42, 1
          %s135 = smul.addr %s134, 64
          %s136 = scalar_lea.vmem [#allocation3], %s135
          %s137 = smul.u32 4, %s11
          %s138 = ssub.s32 13, %s137
          %p139 = scmp.lt.s32.totalorder %s138, 4
          %s140 = scalar_select %p139, %s138, 4
          %s141 = smul.u32 256, %s140
          %p142 = scmp.ne.s32.totalorder 0, %s141
          %s143 = smul.addr %s137, 4
          %s144 = scalar_lea.vmem %s1, %s143
          %s145 = smul.u32 %s140, 4
          // Predicated region
          $region29: #{conv_autoencoder_forward.13} parent=27 // pred_check
            %p146 = pneg %p142
          $region30: #{conv_autoencoder_forward.13} parent=27 // pred_check_branch
            %148 = sbr.rel (%p146) target = $region32
          $region31: #{conv_autoencoder_forward.13} parent=27 // pred_region
            %p149 = scmp.lt.u32.totalorder %s145, 8
            %p150 = pneg %p149
            // Predicated region
            $region33: #{conv_autoencoder_forward.13} parent=31 // pred_check
              _
            $region34: #{conv_autoencoder_forward.13} parent=31 // pred_check_branch
              %152 = sbr.rel (%p149) target = $region36
            $region35: #{conv_autoencoder_forward.13} parent=31 // pred_region
              %s173 = sand.u32 %s145, 7
              %p174 = scmp.eq.s32.totalorder %s173, 0
              // Predicated region
              $region48: #{conv_autoencoder_forward.13} parent=35 // pred_check
                %p175 = pneg %p174
              $region49: #{conv_autoencoder_forward.13} parent=35 // pred_check_branch
                %177 = sbr.rel (%p175) target = $region51
              $region50: #{conv_autoencoder_forward.13} parent=35 // pred_region
                %s178 = sshrl.u32 %s145, 3
                %s179 = sshrl.u32 %s178, 4
                // While loop
                $region52: #{conv_autoencoder_forward.13} parent=50 // loop_pre_header
                  _
                $region53: #{conv_autoencoder_forward.13} parent=50 // loop_header
                  %s183 = sphi 0, %s185
                  %p184 = scmp.ge.s32.totalorder %s183, %s179
                  %s188 = sphi 0, %s321
                  %s189 = sphi %s144, %s324
                  %s190 = sphi %s136, %s325
                $region54: #{conv_autoencoder_forward.13} parent=50 // loop_header_branch
                  %187 = sbr.rel (%p184) target = $region58
                $region55: #{conv_autoencoder_forward.13} parent=50 // loop_body
                  %v191 = vld [vmem:[%s189] sm:$0xff]
                  %192 = vst [vmem:[%s190] sm:$0xff] %v191
                  %v193 = vld [vmem:[%s189 + $0x8] sm:$0xff]
                  %194 = vst [vmem:[%s190 + $0x8] sm:$0xff] %v193
                  %v195 = vld [vmem:[%s189 + $0x10] sm:$0xff]
                  %196 = vst [vmem:[%s190 + $0x10] sm:$0xff] %v195
                  %v197 = vld [vmem:[%s189 + $0x18] sm:$0xff]
                  %198 = vst [vmem:[%s190 + $0x18] sm:$0xff] %v197
                  %v199 = vld [vmem:[%s189 + $0x20] sm:$0xff]
                  %200 = vst [vmem:[%s190 + $0x20] sm:$0xff] %v199
                  %v201 = vld [vmem:[%s189 + $0x28] sm:$0xff]
                  %202 = vst [vmem:[%s190 + $0x28] sm:$0xff] %v201
                  %v203 = vld [vmem:[%s189 + $0x30] sm:$0xff]
                  %204 = vst [vmem:[%s190 + $0x30] sm:$0xff] %v203
                  %v205 = vld [vmem:[%s189 + $0x38] sm:$0xff]
                  %206 = vst [vmem:[%s190 + $0x38] sm:$0xff] %v205
                  %v207 = vld [vmem:[%s189 + $0x40] sm:$0xff]
                  %208 = vst [vmem:[%s190 + $0x40] sm:$0xff] %v207
                  %v209 = vld [vmem:[%s189 + $0x48] sm:$0xff]
                  %210 = vst [vmem:[%s190 + $0x48] sm:$0xff] %v209
                  %v211 = vld [vmem:[%s189 + $0x50] sm:$0xff]
                  %212 = vst [vmem:[%s190 + $0x50] sm:$0xff] %v211
                  %v213 = vld [vmem:[%s189 + $0x58] sm:$0xff]
                  %214 = vst [vmem:[%s190 + $0x58] sm:$0xff] %v213
                  %v215 = vld [vmem:[%s189 + $0x60] sm:$0xff]
                  %216 = vst [vmem:[%s190 + $0x60] sm:$0xff] %v215
                  %v217 = vld [vmem:[%s189 + $0x68] sm:$0xff]
                  %218 = vst [vmem:[%s190 + $0x68] sm:$0xff] %v217
                  %v219 = vld [vmem:[%s189 + $0x70] sm:$0xff]
                  %220 = vst [vmem:[%s190 + $0x70] sm:$0xff] %v219
                  %v221 = vld [vmem:[%s189 + $0x78] sm:$0xff]
                  %222 = vst [vmem:[%s190 + $0x78] sm:$0xff] %v221
                  %v223 = vld [vmem:[%s189 + $0x34] sm:$0xff]
                  %224 = vst [vmem:[%s190 + $0x10] sm:$0xff] %v223
                  %v225 = vld [vmem:[%s189 + $0x3c] sm:$0xff]
                  %226 = vst [vmem:[%s190 + $0x18] sm:$0xff] %v225
                  %v227 = vld [vmem:[%s189 + $0x44] sm:$0xff]
                  %228 = vst [vmem:[%s190 + $0x20] sm:$0xff] %v227
                  %v229 = vld [vmem:[%s189 + $0x4c] sm:$0xff]
                  %230 = vst [vmem:[%s190 + $0x28] sm:$0xff] %v229
                  %v231 = vld [vmem:[%s189 + $0x54] sm:$0xff]
                  %232 = vst [vmem:[%s190 + $0x30] sm:$0xff] %v231
                  %v233 = vld [vmem:[%s189 + $0x5c] sm:$0xff]
                  %234 = vst [vmem:[%s190 + $0x38] sm:$0xff] %v233
                  %v235 = vld [vmem:[%s189 + $0x64] sm:$0xff]
                  %236 = vst [vmem:[%s190 + $0x40] sm:$0xff] %v235
                  %v237 = vld [vmem:[%s189 + $0x6c] sm:$0xff]
                  %238 = vst [vmem:[%s190 + $0x48] sm:$0xff] %v237
                  %v239 = vld [vmem:[%s189 + $0x74] sm:$0xff]
                  %240 = vst [vmem:[%s190 + $0x50] sm:$0xff] %v239
                  %v241 = vld [vmem:[%s189 + $0x7c] sm:$0xff]
                  %242 = vst [vmem:[%s190 + $0x58] sm:$0xff] %v241
                  %v243 = vld [vmem:[%s189 + $0x84] sm:$0xff]
                  %244 = vst [vmem:[%s190 + $0x60] sm:$0xff] %v243
                  %v245 = vld [vmem:[%s189 + $0x8c] sm:$0xff]
                  %246 = vst [vmem:[%s190 + $0x68] sm:$0xff] %v245
                  %v247 = vld [vmem:[%s189 + $0x94] sm:$0xff]
                  %248 = vst [vmem:[%s190 + $0x70] sm:$0xff] %v247
                  %v249 = vld [vmem:[%s189 + $0x9c] sm:$0xff]
                  %250 = vst [vmem:[%s190 + $0x78] sm:$0xff] %v249
                  %v251 = vld [vmem:[%s189 + $0xa4] sm:$0xff]
                  %252 = vst [vmem:[%s190 + $0x80] sm:$0xff] %v251
                  %v253 = vld [vmem:[%s189 + $0xac] sm:$0xff]
                  %254 = vst [vmem:[%s190 + $0x88] sm:$0xff] %v253
                  %v255 = vld [vmem:[%s189 + $0x68] sm:$0xff]
                  %256 = vst [vmem:[%s190 + $0x20] sm:$0xff] %v255
                  %v257 = vld [vmem:[%s189 + $0x70] sm:$0xff]
                  %258 = vst [vmem:[%s190 + $0x28] sm:$0xff] %v257
                  %v259 = vld [vmem:[%s189 + $0x78] sm:$0xff]
                  %260 = vst [vmem:[%s190 + $0x30] sm:$0xff] %v259
                  %v261 = vld [vmem:[%s189 + $0x80] sm:$0xff]
                  %262 = vst [vmem:[%s190 + $0x38] sm:$0xff] %v261
                  %v263 = vld [vmem:[%s189 + $0x88] sm:$0xff]
                  %264 = vst [vmem:[%s190 + $0x40] sm:$0xff] %v263
                  %v265 = vld [vmem:[%s189 + $0x90] sm:$0xff]
                  %266 = vst [vmem:[%s190 + $0x48] sm:$0xff] %v265
                  %v267 = vld [vmem:[%s189 + $0x98] sm:$0xff]
                  %268 = vst [vmem:[%s190 + $0x50] sm:$0xff] %v267
                  %v269 = vld [vmem:[%s189 + $0xa0] sm:$0xff]
                  %270 = vst [vmem:[%s190 + $0x58] sm:$0xff] %v269
                  %v271 = vld [vmem:[%s189 + $0xa8] sm:$0xff]
                  %272 = vst [vmem:[%s190 + $0x60] sm:$0xff] %v271
                  %v273 = vld [vmem:[%s189 + $0xb0] sm:$0xff]
                  %274 = vst [vmem:[%s190 + $0x68] sm:$0xff] %v273
                  %v275 = vld [vmem:[%s189 + $0xb8] sm:$0xff]
                  %276 = vst [vmem:[%s190 + $0x70] sm:$0xff] %v275
                  %v277 = vld [vmem:[%s189 + $0xc0] sm:$0xff]
                  %278 = vst [vmem:[%s190 + $0x78] sm:$0xff] %v277
                  %v279 = vld [vmem:[%s189 + $0xc8] sm:$0xff]
                  %280 = vst [vmem:[%s190 + $0x80] sm:$0xff] %v279
                  %v281 = vld [vmem:[%s189 + $0xd0] sm:$0xff]
                  %282 = vst [vmem:[%s190 + $0x88] sm:$0xff] %v281
                  %v283 = vld [vmem:[%s189 + $0xd8] sm:$0xff]
                  %284 = vst [vmem:[%s190 + $0x90] sm:$0xff] %v283
                  %v285 = vld [vmem:[%s189 + $0xe0] sm:$0xff]
                  %286 = vst [vmem:[%s190 + $0x98] sm:$0xff] %v285
                  %v287 = vld [vmem:[%s189 + $0x9c] sm:$0xff]
                  %288 = vst [vmem:[%s190 + $0x30] sm:$0xff] %v287
                  %v289 = vld [vmem:[%s189 + $0xa4] sm:$0xff]
                  %290 = vst [vmem:[%s190 + $0x38] sm:$0xff] %v289
                  %v291 = vld [vmem:[%s189 + $0xac] sm:$0xff]
                  %292 = vst [vmem:[%s190 + $0x40] sm:$0xff] %v291
                  %v293 = vld [vmem:[%s189 + $0xb4] sm:$0xff]
                  %294 = vst [vmem:[%s190 + $0x48] sm:$0xff] %v293
                  %v295 = vld [vmem:[%s189 + $0xbc] sm:$0xff]
                  %296 = vst [vmem:[%s190 + $0x50] sm:$0xff] %v295
                  %v297 = vld [vmem:[%s189 + $0xc4] sm:$0xff]
                  %298 = vst [vmem:[%s190 + $0x58] sm:$0xff] %v297
                  %v299 = vld [vmem:[%s189 + $0xcc] sm:$0xff]
                  %300 = vst [vmem:[%s190 + $0x60] sm:$0xff] %v299
                  %v301 = vld [vmem:[%s189 + $0xd4] sm:$0xff]
                  %302 = vst [vmem:[%s190 + $0x68] sm:$0xff] %v301
                  %v303 = vld [vmem:[%s189 + $0xdc] sm:$0xff]
                  %304 = vst [vmem:[%s190 + $0x70] sm:$0xff] %v303
                  %v305 = vld [vmem:[%s189 + $0xe4] sm:$0xff]
                  %306 = vst [vmem:[%s190 + $0x78] sm:$0xff] %v305
                  %v307 = vld [vmem:[%s189 + $0xec] sm:$0xff]
                  %308 = vst [vmem:[%s190 + $0x80] sm:$0xff] %v307
                  %v309 = vld [vmem:[%s189 + $0xf4] sm:$0xff]
                  %310 = vst [vmem:[%s190 + $0x88] sm:$0xff] %v309
                  %v311 = vld [vmem:[%s189 + $0xfc] sm:$0xff]
                  %312 = vst [vmem:[%s190 + $0x90] sm:$0xff] %v311
                  %v313 = vld [vmem:[%s189 + $0x104] sm:$0xff]
                  %314 = vst [vmem:[%s190 + $0x98] sm:$0xff] %v313
                  %v315 = vld [vmem:[%s189 + $0x10c] sm:$0xff]
                  %316 = vst [vmem:[%s190 + $0xa0] sm:$0xff] %v315
                  %v317 = vld [vmem:[%s189 + $0x114] sm:$0xff]
                  %318 = vst [vmem:[%s190 + $0xa8] sm:$0xff] %v317
                  %s319 = sadd.s32 1, %s188
                  %p320 = scmp.ge.s32.totalorder %s319, %s179
                  %s321 = scalar_select %p320, 0, %s319
                  %s322 = smul.u32 %s321, 128
                  %s323 = smul.u32 %s321, 128
                  %s324 = scalar_lea.vmem %s144, %s322
                  %s325 = scalar_lea.vmem %s136, %s323 [#allocation3]
                $region56: #{conv_autoencoder_forward.13} parent=50 // loop_footer
                  %s185 = sadd.s32 %s183, 1
                $region57: #{conv_autoencoder_forward.13} parent=50 // loop_footer_branch
                  %182 = sbr.rel target = $region53
                $region58: #{conv_autoencoder_forward.13} parent=50 // loop_exit
                  _
                %s326 = sshrl.u32 %s178, 4
                %s327 = sand.u32 %s178, 15
                %s328 = smul.u32 %s326, 16
                %s329 = smul.u32 128, %s328
                %s330 = sshra.s32 %s329, 4
                %s331 = scalar_lea.vmem %s144, %s330
                %s332 = smul.u32 128, %s328
                %s333 = sshra.s32 %s332, 4
                %s334 = scalar_lea.vmem %s136, %s333 [#allocation3]
                // While loop
                $region59: #{conv_autoencoder_forward.13} parent=50 // loop_pre_header
                  _
                $region60: #{conv_autoencoder_forward.13} parent=50 // loop_header
                  %s338 = sphi 0, %s340
                  %p339 = scmp.ge.s32.totalorder %s338, %s327
                  %s343 = sphi 0, %s356
                  %s344 = sphi %s331, %s359
                  %s345 = sphi %s334, %s360
                $region61: #{conv_autoencoder_forward.13} parent=50 // loop_header_branch
                  %342 = sbr.rel (%p339) target = $region65
                $region62: #{conv_autoencoder_forward.13} parent=50 // loop_body
                  %v346 = vld [vmem:[%s344] sm:$0xff]
                  %347 = vst [vmem:[%s345] sm:$0xff] %v346
                  %v348 = vld [vmem:[%s344 + $0x34] sm:$0xff]
                  %349 = vst [vmem:[%s345 + $0x10] sm:$0xff] %v348
                  %v350 = vld [vmem:[%s344 + $0x68] sm:$0xff]
                  %351 = vst [vmem:[%s345 + $0x20] sm:$0xff] %v350
                  %v352 = vld [vmem:[%s344 + $0x9c] sm:$0xff]
                  %353 = vst [vmem:[%s345 + $0x30] sm:$0xff] %v352
                  %s354 = sadd.s32 1, %s343
                  %p355 = scmp.ge.s32.totalorder %s354, %s327
                  %s356 = scalar_select %p355, 0, %s354
                  %s357 = smul.u32 %s356, 8
                  %s358 = smul.u32 %s356, 8
                  %s359 = scalar_lea.vmem %s331, %s357
                  %s360 = scalar_lea.vmem %s334, %s358 [#allocation3]
                $region63: #{conv_autoencoder_forward.13} parent=50 // loop_footer
                  %s340 = sadd.s32 %s338, 1
                $region64: #{conv_autoencoder_forward.13} parent=50 // loop_footer_branch
                  %337 = sbr.rel target = $region60
                $region65: #{conv_autoencoder_forward.13} parent=50 // loop_exit
                  _
              $region51: #{conv_autoencoder_forward.13} parent=35 // pred_fallthru
                _
              %p361 = pneg %p174
              // Predicated region
              $region66: #{conv_autoencoder_forward.13} parent=35 // pred_check
                _
              $region67: #{conv_autoencoder_forward.13} parent=35 // pred_check_branch
                %363 = sbr.rel (%p174) target = $region69
              $region68: #{conv_autoencoder_forward.13} parent=35 // pred_region
                %s364 = sand.u32 %s145, 7
                %s365 = ssub.s32 %s145, %s364
                %s366 = scalar_lea.vmem %s144, %s365
                %s367 = ssub.s32 %s145, %s364
                %s368 = scalar_lea.vmem %s136, %s367 [#allocation3]
                %s369 = sshrl.u32 %s145, 3
                %s370 = sshrl.u32 %s369, 4
                // While loop
                $region70: #{conv_autoencoder_forward.13} parent=68 // loop_pre_header
                  _
                $region71: #{conv_autoencoder_forward.13} parent=68 // loop_header
                  %s374 = sphi 0, %s376
                  %p375 = scmp.ge.s32.totalorder %s374, %s370
                  %s379 = sphi 0, %s512
                  %s380 = sphi %s144, %s515
                  %s381 = sphi %s136, %s516
                $region72: #{conv_autoencoder_forward.13} parent=68 // loop_header_branch
                  %378 = sbr.rel (%p375) target = $region76
                $region73: #{conv_autoencoder_forward.13} parent=68 // loop_body
                  %v382 = vld [vmem:[%s380] sm:$0xff]
                  %383 = vst [vmem:[%s381] sm:$0xff] %v382
                  %v384 = vld [vmem:[%s380 + $0x8] sm:$0xff]
                  %385 = vst [vmem:[%s381 + $0x8] sm:$0xff] %v384
                  %v386 = vld [vmem:[%s380 + $0x10] sm:$0xff]
                  %387 = vst [vmem:[%s381 + $0x10] sm:$0xff] %v386
                  %v388 = vld [vmem:[%s380 + $0x18] sm:$0xff]
                  %389 = vst [vmem:[%s381 + $0x18] sm:$0xff] %v388
                  %v390 = vld [vmem:[%s380 + $0x20] sm:$0xff]
                  %391 = vst [vmem:[%s381 + $0x20] sm:$0xff] %v390
                  %v392 = vld [vmem:[%s380 + $0x28] sm:$0xff]
                  %393 = vst [vmem:[%s381 + $0x28] sm:$0xff] %v392
                  %v394 = vld [vmem:[%s380 + $0x30] sm:$0xff]
                  %395 = vst [vmem:[%s381 + $0x30] sm:$0xff] %v394
                  %v396 = vld [vmem:[%s380 + $0x38] sm:$0xff]
                  %397 = vst [vmem:[%s381 + $0x38] sm:$0xff] %v396
                  %v398 = vld [vmem:[%s380 + $0x40] sm:$0xff]
                  %399 = vst [vmem:[%s381 + $0x40] sm:$0xff] %v398
                  %v400 = vld [vmem:[%s380 + $0x48] sm:$0xff]
                  %401 = vst [vmem:[%s381 + $0x48] sm:$0xff] %v400
                  %v402 = vld [vmem:[%s380 + $0x50] sm:$0xff]
                  %403 = vst [vmem:[%s381 + $0x50] sm:$0xff] %v402
                  %v404 = vld [vmem:[%s380 + $0x58] sm:$0xff]
                  %405 = vst [vmem:[%s381 + $0x58] sm:$0xff] %v404
                  %v406 = vld [vmem:[%s380 + $0x60] sm:$0xff]
                  %407 = vst [vmem:[%s381 + $0x60] sm:$0xff] %v406
                  %v408 = vld [vmem:[%s380 + $0x68] sm:$0xff]
                  %409 = vst [vmem:[%s381 + $0x68] sm:$0xff] %v408
                  %v410 = vld [vmem:[%s380 + $0x70] sm:$0xff]
                  %411 = vst [vmem:[%s381 + $0x70] sm:$0xff] %v410
                  %v412 = vld [vmem:[%s380 + $0x78] sm:$0xff]
                  %413 = vst [vmem:[%s381 + $0x78] sm:$0xff] %v412
                  %v414 = vld [vmem:[%s380 + $0x34] sm:$0xff]
                  %415 = vst [vmem:[%s381 + $0x10] sm:$0xff] %v414
                  %v416 = vld [vmem:[%s380 + $0x3c] sm:$0xff]
                  %417 = vst [vmem:[%s381 + $0x18] sm:$0xff] %v416
                  %v418 = vld [vmem:[%s380 + $0x44] sm:$0xff]
                  %419 = vst [vmem:[%s381 + $0x20] sm:$0xff] %v418
                  %v420 = vld [vmem:[%s380 + $0x4c] sm:$0xff]
                  %421 = vst [vmem:[%s381 + $0x28] sm:$0xff] %v420
                  %v422 = vld [vmem:[%s380 + $0x54] sm:$0xff]
                  %423 = vst [vmem:[%s381 + $0x30] sm:$0xff] %v422
                  %v424 = vld [vmem:[%s380 + $0x5c] sm:$0xff]
                  %425 = vst [vmem:[%s381 + $0x38] sm:$0xff] %v424
                  %v426 = vld [vmem:[%s380 + $0x64] sm:$0xff]
                  %427 = vst [vmem:[%s381 + $0x40] sm:$0xff] %v426
                  %v428 = vld [vmem:[%s380 + $0x6c] sm:$0xff]
                  %429 = vst [vmem:[%s381 + $0x48] sm:$0xff] %v428
                  %v430 = vld [vmem:[%s380 + $0x74] sm:$0xff]
                  %431 = vst [vmem:[%s381 + $0x50] sm:$0xff] %v430
                  %v432 = vld [vmem:[%s380 + $0x7c] sm:$0xff]
                  %433 = vst [vmem:[%s381 + $0x58] sm:$0xff] %v432
                  %v434 = vld [vmem:[%s380 + $0x84] sm:$0xff]
                  %435 = vst [vmem:[%s381 + $0x60] sm:$0xff] %v434
                  %v436 = vld [vmem:[%s380 + $0x8c] sm:$0xff]
                  %437 = vst [vmem:[%s381 + $0x68] sm:$0xff] %v436
                  %v438 = vld [vmem:[%s380 + $0x94] sm:$0xff]
                  %439 = vst [vmem:[%s381 + $0x70] sm:$0xff] %v438
                  %v440 = vld [vmem:[%s380 + $0x9c] sm:$0xff]
                  %441 = vst [vmem:[%s381 + $0x78] sm:$0xff] %v440
                  %v442 = vld [vmem:[%s380 + $0xa4] sm:$0xff]
                  %443 = vst [vmem:[%s381 + $0x80] sm:$0xff] %v442
                  %v444 = vld [vmem:[%s380 + $0xac] sm:$0xff]
                  %445 = vst [vmem:[%s381 + $0x88] sm:$0xff] %v444
                  %v446 = vld [vmem:[%s380 + $0x68] sm:$0xff]
                  %447 = vst [vmem:[%s381 + $0x20] sm:$0xff] %v446
                  %v448 = vld [vmem:[%s380 + $0x70] sm:$0xff]
                  %449 = vst [vmem:[%s381 + $0x28] sm:$0xff] %v448
                  %v450 = vld [vmem:[%s380 + $0x78] sm:$0xff]
                  %451 = vst [vmem:[%s381 + $0x30] sm:$0xff] %v450
                  %v452 = vld [vmem:[%s380 + $0x80] sm:$0xff]
                  %453 = vst [vmem:[%s381 + $0x38] sm:$0xff] %v452
                  %v454 = vld [vmem:[%s380 + $0x88] sm:$0xff]
                  %455 = vst [vmem:[%s381 + $0x40] sm:$0xff] %v454
                  %v456 = vld [vmem:[%s380 + $0x90] sm:$0xff]
                  %457 = vst [vmem:[%s381 + $0x48] sm:$0xff] %v456
                  %v458 = vld [vmem:[%s380 + $0x98] sm:$0xff]
                  %459 = vst [vmem:[%s381 + $0x50] sm:$0xff] %v458
                  %v460 = vld [vmem:[%s380 + $0xa0] sm:$0xff]
                  %461 = vst [vmem:[%s381 + $0x58] sm:$0xff] %v460
                  %v462 = vld [vmem:[%s380 + $0xa8] sm:$0xff]
                  %463 = vst [vmem:[%s381 + $0x60] sm:$0xff] %v462
                  %v464 = vld [vmem:[%s380 + $0xb0] sm:$0xff]
                  %465 = vst [vmem:[%s381 + $0x68] sm:$0xff] %v464
                  %v466 = vld [vmem:[%s380 + $0xb8] sm:$0xff]
                  %467 = vst [vmem:[%s381 + $0x70] sm:$0xff] %v466
                  %v468 = vld [vmem:[%s380 + $0xc0] sm:$0xff]
                  %469 = vst [vmem:[%s381 + $0x78] sm:$0xff] %v468
                  %v470 = vld [vmem:[%s380 + $0xc8] sm:$0xff]
                  %471 = vst [vmem:[%s381 + $0x80] sm:$0xff] %v470
                  %v472 = vld [vmem:[%s380 + $0xd0] sm:$0xff]
                  %473 = vst [vmem:[%s381 + $0x88] sm:$0xff] %v472
                  %v474 = vld [vmem:[%s380 + $0xd8] sm:$0xff]
                  %475 = vst [vmem:[%s381 + $0x90] sm:$0xff] %v474
                  %v476 = vld [vmem:[%s380 + $0xe0] sm:$0xff]
                  %477 = vst [vmem:[%s381 + $0x98] sm:$0xff] %v476
                  %v478 = vld [vmem:[%s380 + $0x9c] sm:$0xff]
                  %479 = vst [vmem:[%s381 + $0x30] sm:$0xff] %v478
                  %v480 = vld [vmem:[%s380 + $0xa4] sm:$0xff]
                  %481 = vst [vmem:[%s381 + $0x38] sm:$0xff] %v480
                  %v482 = vld [vmem:[%s380 + $0xac] sm:$0xff]
                  %483 = vst [vmem:[%s381 + $0x40] sm:$0xff] %v482
                  %v484 = vld [vmem:[%s380 + $0xb4] sm:$0xff]
                  %485 = vst [vmem:[%s381 + $0x48] sm:$0xff] %v484
                  %v486 = vld [vmem:[%s380 + $0xbc] sm:$0xff]
                  %487 = vst [vmem:[%s381 + $0x50] sm:$0xff] %v486
                  %v488 = vld [vmem:[%s380 + $0xc4] sm:$0xff]
                  %489 = vst [vmem:[%s381 + $0x58] sm:$0xff] %v488
                  %v490 = vld [vmem:[%s380 + $0xcc] sm:$0xff]
                  %491 = vst [vmem:[%s381 + $0x60] sm:$0xff] %v490
                  %v492 = vld [vmem:[%s380 + $0xd4] sm:$0xff]
                  %493 = vst [vmem:[%s381 + $0x68] sm:$0xff] %v492
                  %v494 = vld [vmem:[%s380 + $0xdc] sm:$0xff]
                  %495 = vst [vmem:[%s381 + $0x70] sm:$0xff] %v494
                  %v496 = vld [vmem:[%s380 + $0xe4] sm:$0xff]
                  %497 = vst [vmem:[%s381 + $0x78] sm:$0xff] %v496
                  %v498 = vld [vmem:[%s380 + $0xec] sm:$0xff]
                  %499 = vst [vmem:[%s381 + $0x80] sm:$0xff] %v498
                  %v500 = vld [vmem:[%s380 + $0xf4] sm:$0xff]
                  %501 = vst [vmem:[%s381 + $0x88] sm:$0xff] %v500
                  %v502 = vld [vmem:[%s380 + $0xfc] sm:$0xff]
                  %503 = vst [vmem:[%s381 + $0x90] sm:$0xff] %v502
                  %v504 = vld [vmem:[%s380 + $0x104] sm:$0xff]
                  %505 = vst [vmem:[%s381 + $0x98] sm:$0xff] %v504
                  %v506 = vld [vmem:[%s380 + $0x10c] sm:$0xff]
                  %507 = vst [vmem:[%s381 + $0xa0] sm:$0xff] %v506
                  %v508 = vld [vmem:[%s380 + $0x114] sm:$0xff]
                  %509 = vst [vmem:[%s381 + $0xa8] sm:$0xff] %v508
                  %s510 = sadd.s32 1, %s379
                  %p511 = scmp.ge.s32.totalorder %s510, %s370
                  %s512 = scalar_select %p511, 0, %s510
                  %s513 = smul.u32 %s512, 128
                  %s514 = smul.u32 %s512, 128
                  %s515 = scalar_lea.vmem %s144, %s513
                  %s516 = scalar_lea.vmem %s136, %s514 [#allocation3]
                $region74: #{conv_autoencoder_forward.13} parent=68 // loop_footer
                  %s376 = sadd.s32 %s374, 1
                $region75: #{conv_autoencoder_forward.13} parent=68 // loop_footer_branch
                  %373 = sbr.rel target = $region71
                $region76: #{conv_autoencoder_forward.13} parent=68 // loop_exit
                  _
                %s517 = sshrl.u32 %s369, 4
                %s518 = sand.u32 %s369, 15
                %s519 = smul.u32 %s517, 16
                %s520 = smul.u32 128, %s519
                %s521 = sshra.s32 %s520, 4
                %s522 = scalar_lea.vmem %s144, %s521
                %s523 = smul.u32 128, %s519
                %s524 = sshra.s32 %s523, 4
                %s525 = scalar_lea.vmem %s136, %s524 [#allocation3]
                // While loop
                $region77: #{conv_autoencoder_forward.13} parent=68 // loop_pre_header
                  _
                $region78: #{conv_autoencoder_forward.13} parent=68 // loop_header
                  %s529 = sphi 0, %s531
                  %p530 = scmp.ge.s32.totalorder %s529, %s518
                  %s534 = sphi 0, %s547
                  %s535 = sphi %s522, %s550
                  %s536 = sphi %s525, %s551
                $region79: #{conv_autoencoder_forward.13} parent=68 // loop_header_branch
                  %533 = sbr.rel (%p530) target = $region83
                $region80: #{conv_autoencoder_forward.13} parent=68 // loop_body
                  %v537 = vld [vmem:[%s535] sm:$0xff]
                  %538 = vst [vmem:[%s536] sm:$0xff] %v537
                  %v539 = vld [vmem:[%s535 + $0x34] sm:$0xff]
                  %540 = vst [vmem:[%s536 + $0x10] sm:$0xff] %v539
                  %v541 = vld [vmem:[%s535 + $0x68] sm:$0xff]
                  %542 = vst [vmem:[%s536 + $0x20] sm:$0xff] %v541
                  %v543 = vld [vmem:[%s535 + $0x9c] sm:$0xff]
                  %544 = vst [vmem:[%s536 + $0x30] sm:$0xff] %v543
                  %s545 = sadd.s32 1, %s534
                  %p546 = scmp.ge.s32.totalorder %s545, %s518
                  %s547 = scalar_select %p546, 0, %s545
                  %s548 = smul.u32 %s547, 8
                  %s549 = smul.u32 %s547, 8
                  %s550 = scalar_lea.vmem %s522, %s548
                  %s551 = scalar_lea.vmem %s525, %s549 [#allocation3]
                $region81: #{conv_autoencoder_forward.13} parent=68 // loop_footer
                  %s531 = sadd.s32 %s529, 1
                $region82: #{conv_autoencoder_forward.13} parent=68 // loop_footer_branch
                  %528 = sbr.rel target = $region78
                $region83: #{conv_autoencoder_forward.13} parent=68 // loop_exit
                  _
                %s552 = sshllo.u32 0, %s364
                loop: start=0, step=1, limit=1
                $region84: #{conv_autoencoder_forward.13} parent=68 // loop_pre_header
                  _
                $region85: #{conv_autoencoder_forward.13} parent=68 // loop_header
                  %s554 = sphi 0, %s558
                  %p555 = scmp.ge.s32.totalorder %s554, 1
                  %s559 = sphi %s366, %s366
                  %s560 = sphi %s368, %s368
                $region86: #{conv_autoencoder_forward.13} parent=68 // loop_header_branch
                  %557 = sbr.rel (%p555) target = $region90
                $region87: #{conv_autoencoder_forward.13} parent=68 // loop_body
                  %v561 = vld [vmem:[%s559] sm:%s552]
                  %562 = vst [vmem:[%s560] sm:%s552] %v561
                  %v563 = vld [vmem:[%s559 + $0x34] sm:%s552]
                  %564 = vst [vmem:[%s560 + $0x10] sm:%s552] %v563
                  %v565 = vld [vmem:[%s559 + $0x68] sm:%s552]
                  %566 = vst [vmem:[%s560 + $0x20] sm:%s552] %v565
                  %v567 = vld [vmem:[%s559 + $0x9c] sm:%s552]
                  %568 = vst [vmem:[%s560 + $0x30] sm:%s552] %v567
                $region88: #{conv_autoencoder_forward.13} parent=68 // loop_footer
                  %s558 = sadd.s32 1, %s554
                $region89: #{conv_autoencoder_forward.13} parent=68 // loop_footer_branch
                  %553 = sbr.rel target = $region85
                $region90: #{conv_autoencoder_forward.13} parent=68 // loop_exit
                  _
              $region69: #{conv_autoencoder_forward.13} parent=35 // pred_fallthru
                _
            $region36: #{conv_autoencoder_forward.13} parent=31 // pred_fallthru
              _
            // Predicated region
            $region37: #{conv_autoencoder_forward.13} parent=31 // pred_check
              %p153 = pneg %p149
            $region38: #{conv_autoencoder_forward.13} parent=31 // pred_check_branch
              %155 = sbr.rel (%p153) target = $region40
            $region39: #{conv_autoencoder_forward.13} parent=31 // pred_region
              %s156 = sshllo.u32 0, %s145
              loop: start=0, step=1, limit=1
              $region41: #{conv_autoencoder_forward.13} parent=39 // loop_pre_header
                _
              $region42: #{conv_autoencoder_forward.13} parent=39 // loop_header
                %s158 = sphi 0, %s162
                %p159 = scmp.ge.s32.totalorder %s158, 1
                %s163 = sphi %s144, %s144
                %s164 = sphi %s136, %s136
              $region43: #{conv_autoencoder_forward.13} parent=39 // loop_header_branch
                %161 = sbr.rel (%p159) target = $region47
              $region44: #{conv_autoencoder_forward.13} parent=39 // loop_body
                %v165 = vld [vmem:[%s163] sm:%s156]
                %166 = vst [vmem:[%s164] sm:%s156] %v165
                %v167 = vld [vmem:[%s163 + $0x34] sm:%s156]
                %168 = vst [vmem:[%s164 + $0x10] sm:%s156] %v167
                %v169 = vld [vmem:[%s163 + $0x68] sm:%s156]
                %170 = vst [vmem:[%s164 + $0x20] sm:%s156] %v169
                %v171 = vld [vmem:[%s163 + $0x9c] sm:%s156]
                %172 = vst [vmem:[%s164 + $0x30] sm:%s156] %v171
              $region45: #{conv_autoencoder_forward.13} parent=39 // loop_footer
                %s162 = sadd.s32 1, %s158
              $region46: #{conv_autoencoder_forward.13} parent=39 // loop_footer_branch
                %157 = sbr.rel target = $region42
              $region47: #{conv_autoencoder_forward.13} parent=39 // loop_exit
                _
            $region40: #{conv_autoencoder_forward.13} parent=31 // pred_fallthru
              _
          $region32: #{conv_autoencoder_forward.13} parent=27 // pred_fallthru
            _
          %569 = vnop
        $region28: #{conv_autoencoder_forward.13} parent=23 // pred_fallthru
          _
      $region24: #{conv_autoencoder_forward.13} parent=5 // pred_fallthru
        _
      %p570 = scmp.le.s32.totalorder 1, %s11
      %p571 = scmp.lt.s32.totalorder %s11, 5
      %p572 = pnand %p570, %p571
      %p573 = pneg %p572
      // Predicated region
      $region91: #{conv_autoencoder_forward.13} parent=5 // pred_check
        _
      $region92: #{conv_autoencoder_forward.13} parent=5 // pred_check_branch
        %575 = sbr.rel (%p572) target = $region94
      $region93: #{conv_autoencoder_forward.13} parent=5 // pred_region
        %s576 = ssub.s32 %s11, 1
        %s577 = sand.u32 %s45, 1
        %s578 = sand.u32 %s45, 1
        %s579 = smul.addr %s578, 64
        %s580 = scalar_lea.vmem [#allocation3], %s579
        // Predicated region
        $region95: #{conv_autoencoder_forward.13} parent=93 // pred_check
          %p581 = pneg %p58
        $region96: #{conv_autoencoder_forward.13} parent=93 // pred_check_branch
          %583 = sbr.rel (%p581) target = $region98
        $region97: #{conv_autoencoder_forward.13} parent=93 // pred_region
          _
        $region98: #{conv_autoencoder_forward.13} parent=93 // pred_fallthru
          _
        %p584 = pneg %p32
        %p585 = pneg %p29
        %s586 = sand.u32 %s45, 1
        %s587 = sand.u32 %s45, 1
        %s588 = smul.addr %s587, 64
        %s589 = scalar_lea.vmem [#allocation3], %s588
        %p590 = pneg %p58
        %p591 = pneg %p55
        %p592 = pneg %p79
        %p593 = pneg %p76
        %p594 = pneg %p105
        %p595 = pneg %p102
        %s596 = sand.u32 %s92, 1
        %s597 = sand.u32 %s92, 1
        %s598 = smul.addr %s597, 4
        %s599 = scalar_lea.vmem [#allocation4], %s598
        %s600 = smul.u32 4, %s16
        %s601 = ssub.s32 13, %s600
        %p602 = scmp.lt.s32.totalorder %s601, 4
        %s603 = scalar_select %p602, %s601, 4
        %s604 = smul.u32 256, %s603
        %s605 = smul.u32 4, %s16
        %s606 = ssub.s32 13, %s605
        %p607 = scmp.lt.s32.totalorder %s606, 4
        %s608 = scalar_select %p607, %s606, 4
        %s609 = smul.u32 16, %s608
        %v611 = vld [vmem:[%s0] sm:$0x1]
        %v612 = vld [vmem:[%s580] sm:$0xff]
        %v613 = vld [vmem:[%s580 + $0x8] sm:$0xff]
        %v614 = vld [vmem:[%s580 + $0x10] sm:$0xff]
        %v615 = vld [vmem:[%s580 + $0x18] sm:$0xff]
        %v616 = vld [vmem:[%s580 + $0x20] sm:$0xff]
        %v617 = vld [vmem:[%s580 + $0x28] sm:$0xff]
        %v618 = vld [vmem:[%s580 + $0x30] sm:$0xff]
        %v619 = vld [vmem:[%s580 + $0x38] sm:$0xff]
        %v620 = vld [vmem:[#allocation2] sm:$0x1]
        %622 = vset.pattern.permute.xlu0 0
        %623 = vperm.xlu0 %622, %v620
        %v624 = vpop.permute.xlu0 %623
        %v626 = vlaneseq
        %v627 = vshrl.u32 %v626, 7
        %v628 = vsub.s32 0, %v627
        %v629 = vrot.slane %v624, %v628
        %v638 = vunpack.c.l.b16 %v612
        %v639 = vunpack.c.h.b16 %v612
        %v640 = vunpack.c.l.b16 %v613
        %v641 = vunpack.c.h.b16 %v613
        %v642 = vunpack.c.l.b16 %v614
        %v643 = vunpack.c.h.b16 %v614
        %v644 = vunpack.c.l.b16 %v615
        %v645 = vunpack.c.h.b16 %v615
        %v646 = vunpack.c.l.b16 %v616
        %v647 = vunpack.c.h.b16 %v616
        %v648 = vunpack.c.l.b16 %v617
        %v649 = vunpack.c.h.b16 %v617
        %v650 = vunpack.c.l.b16 %v618
        %v651 = vunpack.c.h.b16 %v618
        %v652 = vunpack.c.l.b16 %v619
        %v653 = vunpack.c.h.b16 %v619
        %v654 = vpack.c.b16 %v642, %v638
        %v655 = vpack.c.b16 %v643, %v639
        %v656 = vpack.c.b16 %v644, %v640
        %v657 = vpack.c.b16 %v645, %v641
        %v658 = vpack.c.b16 %v650, %v646
        %v659 = vpack.c.b16 %v651, %v647
        %v660 = vpack.c.b16 %v652, %v648
        %v661 = vpack.c.b16 %v653, %v649
        %vm670 = vcmask 261120
        %v672 = vsel %vm670, %v611, 0
        %674 = vmatprep.subr.bf16.mxu0 %v655
        %675 = vmatpush1.bf16.msra.mxu0 %v654
        %676 = vmatprep.subr.bf16.mxu0 %v659
        %677 = vmatpush1.bf16.msra.mxu0 %v658
        %678 = vmatprep.subr.bf16.mxu0 0
        %679 = vmatpush1.bf16.msra.mxu0 0
        %680 = vmatprep.subr.bf16.mxu0 0
        %681 = vmatpush1.bf16.msra.mxu0 0
        %682 = vmatprep.subr.bf16.mxu0 0
        %683 = vmatpush1.bf16.msra.mxu0 0
        %684 = vmatprep.subr.bf16.mxu0 0
        %685 = vmatpush1.bf16.msra.mxu0 0
        %686 = vmatprep.subr.bf16.mxu0 0
        %687 = vmatpush1.bf16.msra.mxu0 0
        %688 = vmatprep.subr.bf16.mxu0 0
        %689 = vmatpush1.bf16.msra.mxu0 0
        %690 = vmatprep.subr.bf16.mxu0 0
        %691 = vmatpush1.bf16.msra.mxu0 0
        %692 = vmatprep.subr.bf16.mxu0 0
        %693 = vmatpush1.bf16.msra.mxu0 0
        %694 = vmatprep.subr.bf16.mxu0 0
        %695 = vmatpush1.bf16.msra.mxu0 0
        %696 = vmatprep.subr.bf16.mxu0 0
        %697 = vmatpush1.bf16.msra.mxu0 0
        %698 = vmatprep.subr.bf16.mxu0 0
        %699 = vmatpush1.bf16.msra.mxu0 0
        %700 = vmatprep.subr.bf16.mxu0 0
        %701 = vmatpush1.bf16.msra.mxu0 0
        %702 = vmatprep.subr.bf16.mxu0 0
        %703 = vmatpush1.bf16.msra.mxu0 0
        %704 = vmatprep.subr.bf16.mxu0 0
        %705 = vmatpush1.bf16.msra.mxu0 0
        %706 = vmatprep.mubr.bf16.mxu0 0
        %707 = vmatmul.mubr.bf16.gmra.mrb[0].mxu0 %v672
        %v708 = vpop.f32.mrb[0].mxu0
        %v709 = vadd.f32 %v629, %v708
        %v710 = vpop.f32.mrb[0].mxu0
        %v711 = vadd.f32 %v629, %v710
        %v712 = vpop.f32.mrb[0].mxu0
        %v713 = vpop.f32.mrb[0].mxu0
        %714 = vdwg.mxu0
        %715 = vmatprep.subr.bf16.mxu0 %v657
        %716 = vmatpush1.bf16.msra.mxu0 %v656
        %717 = vmatprep.subr.bf16.mxu0 %v661
        %718 = vmatpush1.bf16.msra.mxu0 %v660
        %719 = vmatprep.subr.bf16.mxu0 0
        %720 = vmatpush1.bf16.msra.mxu0 0
        %721 = vmatprep.subr.bf16.mxu0 0
        %722 = vmatpush1.bf16.msra.mxu0 0
        %723 = vmatprep.subr.bf16.mxu0 0
        %724 = vmatpush1.bf16.msra.mxu0 0
        %725 = vmatprep.subr.bf16.mxu0 0
        %726 = vmatpush1.bf16.msra.mxu0 0
        %727 = vmatprep.subr.bf16.mxu0 0
        %728 = vmatpush1.bf16.msra.mxu0 0
        %729 = vmatprep.subr.bf16.mxu0 0
        %730 = vmatpush1.bf16.msra.mxu0 0
        %731 = vmatprep.subr.bf16.mxu0 0
        %732 = vmatpush1.bf16.msra.mxu0 0
        %733 = vmatprep.subr.bf16.mxu0 0
        %734 = vmatpush1.bf16.msra.mxu0 0
        %735 = vmatprep.subr.bf16.mxu0 0
        %736 = vmatpush1.bf16.msra.mxu0 0
        %737 = vmatprep.subr.bf16.mxu0 0
        %738 = vmatpush1.bf16.msra.mxu0 0
        %739 = vmatprep.subr.bf16.mxu0 0
        %740 = vmatpush1.bf16.msra.mxu0 0
        %741 = vmatprep.subr.bf16.mxu0 0
        %742 = vmatpush1.bf16.msra.mxu0 0
        %743 = vmatprep.subr.bf16.mxu0 0
        %744 = vmatpush1.bf16.msra.mxu0 0
        %745 = vmatprep.subr.bf16.mxu0 0
        %746 = vmatpush1.bf16.msra.mxu0 0
        %747 = vmatprep.mubr.bf16.mxu0 0
        %748 = vmatmul.mubr.bf16.gmra.mrb[0].mxu0 %v672
        %v749 = vpop.f32.mrb[0].mxu0
        %v750 = vadd.f32 %v629, %v749
        %v751 = vpop.f32.mrb[0].mxu0
        %v752 = vadd.f32 %v629, %v751
        %v753 = vpop.f32.mrb[0].mxu0
        %v754 = vpop.f32.mrb[0].mxu0
        %755 = vdwg.mxu0
        %v756 = vtanh.pop %v709
        %v757 = vtanh.pop %v711
        %v758 = vtanh.pop %v750
        %v759 = vtanh.pop %v752
        %v764 = vcombine.low %v756, %v757
        %v765 = vcombine.low %v758, %v759
        %v767 = vunpack.c.l.s4 1966171168
        %v768 = vunpack.c.0.s8 %v767
        %v769 = vlaneseq
        %v770 = vshrl.u32 %v769, 7
        %v771 = vsub.s32 %v768, %v770
        %v772 = vrot.slane %v764, %v771
        %v774 = vunpack.c.l.s4 1966171168
        %v775 = vunpack.c.0.s8 %v774
        %v776 = vlaneseq
        %v777 = vshrl.u32 %v776, 7
        %v778 = vsub.s32 %v775, %v777
        %v779 = vrot.slane %v765, %v778
        %v780 = vcombine.low %v772, %v779
        %v782 = vunpack.c.l.s4 1966171168
        %v783 = vunpack.c.0.s8 %v782
        %v784 = vlaneseq
        %v785 = vshrl.u32 %v784, 7
        %v786 = vsub.s32 %v783, %v785
        %v787 = vrot.slane %v780, %v786
        %v789 = vlaneseq
        %vm790 = vcmp.ge.s32.totalorder %v789, 0
        %vm791 = vcmp.lt.s32.totalorder %v789, 512
        %vm792 = vmand %vm790, %vm791
        %793 = vst.msk [vmem:[%s599] sm:$0xf] %vm792, %v787
        %s794 = sand.u32 %s92, 1
        %s795 = sand.u32 %s92, 1
        %s796 = smul.addr %s795, 4
        %s797 = scalar_lea.vmem [#allocation4], %s796
        // Predicated region
        $region99: #{conv_autoencoder_forward.13} parent=93 // pred_check
          %p798 = pneg %p102
        $region100: #{conv_autoencoder_forward.13} parent=93 // pred_check_branch
          %800 = sbr.rel (%p798) target = $region102
        $region101: #{conv_autoencoder_forward.13} parent=93 // pred_region
          %s801 = smul.u32 4, %s16
          %s802 = ssub.s32 13, %s801
          %p803 = scmp.lt.s32.totalorder %s802, 4
          %s804 = scalar_select %p803, %s802, 4
          %s805 = smul.u32 16, %s804
          %p806 = scmp.ne.s32.totalorder 0, %s805
          %s807 = scalar_lea.vmem %s3, %s801
          // Predicated region
          $region103: #{conv_autoencoder_forward.13} parent=101 // pred_check
            %p808 = pneg %p806
          $region104: #{conv_autoencoder_forward.13} parent=101 // pred_check_branch
            %810 = sbr.rel (%p808) target = $region106
          $region105: #{conv_autoencoder_forward.13} parent=101 // pred_region
            %p811 = scmp.lt.u32.totalorder %s804, 8
            %p812 = pneg %p811
            // Predicated region
            $region107: #{conv_autoencoder_forward.13} parent=105 // pred_check
              _
            $region108: #{conv_autoencoder_forward.13} parent=105 // pred_check_branch
              %814 = sbr.rel (%p811) target = $region110
            $region109: #{conv_autoencoder_forward.13} parent=105 // pred_region
              %s829 = sand.u32 %s804, 7
              %p830 = scmp.eq.s32.totalorder %s829, 0
              // Predicated region
              $region122: #{conv_autoencoder_forward.13} parent=109 // pred_check
                %p831 = pneg %p830
              $region123: #{conv_autoencoder_forward.13} parent=109 // pred_check_branch
                %833 = sbr.rel (%p831) target = $region125
              $region124: #{conv_autoencoder_forward.13} parent=109 // pred_region
                %s834 = sshrl.u32 %s804, 3
                %s835 = sshrl.u32 %s834, 6
                // While loop
                $region126: #{conv_autoencoder_forward.13} parent=124 // loop_pre_header
                  _
                $region127: #{conv_autoencoder_forward.13} parent=124 // loop_header
                  %s839 = sphi 0, %s841
                  %p840 = scmp.ge.s32.totalorder %s839, %s835
                  %s844 = sphi 0, %s977
                  %s845 = sphi %s797, %s980
                  %s846 = sphi %s807, %s981
                $region128: #{conv_autoencoder_forward.13} parent=124 // loop_header_branch
                  %843 = sbr.rel (%p840) target = $region132
                $region129: #{conv_autoencoder_forward.13} parent=124 // loop_body
                  %v847 = vld [vmem:[%s845] sm:$0xff]
                  %848 = vst [vmem:[%s846] sm:$0xff] %v847
                  %v849 = vld [vmem:[%s845 + $0x8] sm:$0xff]
                  %850 = vst [vmem:[%s846 + $0x8] sm:$0xff] %v849
                  %v851 = vld [vmem:[%s845 + $0x10] sm:$0xff]
                  %852 = vst [vmem:[%s846 + $0x10] sm:$0xff] %v851
                  %v853 = vld [vmem:[%s845 + $0x18] sm:$0xff]
                  %854 = vst [vmem:[%s846 + $0x18] sm:$0xff] %v853
                  %v855 = vld [vmem:[%s845 + $0x20] sm:$0xff]
                  %856 = vst [vmem:[%s846 + $0x20] sm:$0xff] %v855
                  %v857 = vld [vmem:[%s845 + $0x28] sm:$0xff]
                  %858 = vst [vmem:[%s846 + $0x28] sm:$0xff] %v857
                  %v859 = vld [vmem:[%s845 + $0x30] sm:$0xff]
                  %860 = vst [vmem:[%s846 + $0x30] sm:$0xff] %v859
                  %v861 = vld [vmem:[%s845 + $0x38] sm:$0xff]
                  %862 = vst [vmem:[%s846 + $0x38] sm:$0xff] %v861
                  %v863 = vld [vmem:[%s845 + $0x40] sm:$0xff]
                  %864 = vst [vmem:[%s846 + $0x40] sm:$0xff] %v863
                  %v865 = vld [vmem:[%s845 + $0x48] sm:$0xff]
                  %866 = vst [vmem:[%s846 + $0x48] sm:$0xff] %v865
                  %v867 = vld [vmem:[%s845 + $0x50] sm:$0xff]
                  %868 = vst [vmem:[%s846 + $0x50] sm:$0xff] %v867
                  %v869 = vld [vmem:[%s845 + $0x58] sm:$0xff]
                  %870 = vst [vmem:[%s846 + $0x58] sm:$0xff] %v869
                  %v871 = vld [vmem:[%s845 + $0x60] sm:$0xff]
                  %872 = vst [vmem:[%s846 + $0x60] sm:$0xff] %v871
                  %v873 = vld [vmem:[%s845 + $0x68] sm:$0xff]
                  %874 = vst [vmem:[%s846 + $0x68] sm:$0xff] %v873
                  %v875 = vld [vmem:[%s845 + $0x70] sm:$0xff]
                  %876 = vst [vmem:[%s846 + $0x70] sm:$0xff] %v875
                  %v877 = vld [vmem:[%s845 + $0x78] sm:$0xff]
                  %878 = vst [vmem:[%s846 + $0x78] sm:$0xff] %v877
                  %v879 = vld [vmem:[%s845 + $0x80] sm:$0xff]
                  %880 = vst [vmem:[%s846 + $0x80] sm:$0xff] %v879
                  %v881 = vld [vmem:[%s845 + $0x88] sm:$0xff]
                  %882 = vst [vmem:[%s846 + $0x88] sm:$0xff] %v881
                  %v883 = vld [vmem:[%s845 + $0x90] sm:$0xff]
                  %884 = vst [vmem:[%s846 + $0x90] sm:$0xff] %v883
                  %v885 = vld [vmem:[%s845 + $0x98] sm:$0xff]
                  %886 = vst [vmem:[%s846 + $0x98] sm:$0xff] %v885
                  %v887 = vld [vmem:[%s845 + $0xa0] sm:$0xff]
                  %888 = vst [vmem:[%s846 + $0xa0] sm:$0xff] %v887
                  %v889 = vld [vmem:[%s845 + $0xa8] sm:$0xff]
                  %890 = vst [vmem:[%s846 + $0xa8] sm:$0xff] %v889
                  %v891 = vld [vmem:[%s845 + $0xb0] sm:$0xff]
                  %892 = vst [vmem:[%s846 + $0xb0] sm:$0xff] %v891
                  %v893 = vld [vmem:[%s845 + $0xb8] sm:$0xff]
                  %894 = vst [vmem:[%s846 + $0xb8] sm:$0xff] %v893
                  %v895 = vld [vmem:[%s845 + $0xc0] sm:$0xff]
                  %896 = vst [vmem:[%s846 + $0xc0] sm:$0xff] %v895
                  %v897 = vld [vmem:[%s845 + $0xc8] sm:$0xff]
                  %898 = vst [vmem:[%s846 + $0xc8] sm:$0xff] %v897
                  %v899 = vld [vmem:[%s845 + $0xd0] sm:$0xff]
                  %900 = vst [vmem:[%s846 + $0xd0] sm:$0xff] %v899
                  %v901 = vld [vmem:[%s845 + $0xd8] sm:$0xff]
                  %902 = vst [vmem:[%s846 + $0xd8] sm:$0xff] %v901
                  %v903 = vld [vmem:[%s845 + $0xe0] sm:$0xff]
                  %904 = vst [vmem:[%s846 + $0xe0] sm:$0xff] %v903
                  %v905 = vld [vmem:[%s845 + $0xe8] sm:$0xff]
                  %906 = vst [vmem:[%s846 + $0xe8] sm:$0xff] %v905
                  %v907 = vld [vmem:[%s845 + $0xf0] sm:$0xff]
                  %908 = vst [vmem:[%s846 + $0xf0] sm:$0xff] %v907
                  %v909 = vld [vmem:[%s845 + $0xf8] sm:$0xff]
                  %910 = vst [vmem:[%s846 + $0xf8] sm:$0xff] %v909
                  %v911 = vld [vmem:[%s845 + $0x100] sm:$0xff]
                  %912 = vst [vmem:[%s846 + $0x100] sm:$0xff] %v911
                  %v913 = vld [vmem:[%s845 + $0x108] sm:$0xff]
                  %914 = vst [vmem:[%s846 + $0x108] sm:$0xff] %v913
                  %v915 = vld [vmem:[%s845 + $0x110] sm:$0xff]
                  %916 = vst [vmem:[%s846 + $0x110] sm:$0xff] %v915
                  %v917 = vld [vmem:[%s845 + $0x118] sm:$0xff]
                  %918 = vst [vmem:[%s846 + $0x118] sm:$0xff] %v917
                  %v919 = vld [vmem:[%s845 + $0x120] sm:$0xff]
                  %920 = vst [vmem:[%s846 + $0x120] sm:$0xff] %v919
                  %v921 = vld [vmem:[%s845 + $0x128] sm:$0xff]
                  %922 = vst [vmem:[%s846 + $0x128] sm:$0xff] %v921
                  %v923 = vld [vmem:[%s845 + $0x130] sm:$0xff]
                  %924 = vst [vmem:[%s846 + $0x130] sm:$0xff] %v923
                  %v925 = vld [vmem:[%s845 + $0x138] sm:$0xff]
                  %926 = vst [vmem:[%s846 + $0x138] sm:$0xff] %v925
                  %v927 = vld [vmem:[%s845 + $0x140] sm:$0xff]
                  %928 = vst [vmem:[%s846 + $0x140] sm:$0xff] %v927
                  %v929 = vld [vmem:[%s845 + $0x148] sm:$0xff]
                  %930 = vst [vmem:[%s846 + $0x148] sm:$0xff] %v929
                  %v931 = vld [vmem:[%s845 + $0x150] sm:$0xff]
                  %932 = vst [vmem:[%s846 + $0x150] sm:$0xff] %v931
                  %v933 = vld [vmem:[%s845 + $0x158] sm:$0xff]
                  %934 = vst [vmem:[%s846 + $0x158] sm:$0xff] %v933
                  %v935 = vld [vmem:[%s845 + $0x160] sm:$0xff]
                  %936 = vst [vmem:[%s846 + $0x160] sm:$0xff] %v935
                  %v937 = vld [vmem:[%s845 + $0x168] sm:$0xff]
                  %938 = vst [vmem:[%s846 + $0x168] sm:$0xff] %v937
                  %v939 = vld [vmem:[%s845 + $0x170] sm:$0xff]
                  %940 = vst [vmem:[%s846 + $0x170] sm:$0xff] %v939
                  %v941 = vld [vmem:[%s845 + $0x178] sm:$0xff]
                  %942 = vst [vmem:[%s846 + $0x178] sm:$0xff] %v941
                  %v943 = vld [vmem:[%s845 + $0x180] sm:$0xff]
                  %944 = vst [vmem:[%s846 + $0x180] sm:$0xff] %v943
                  %v945 = vld [vmem:[%s845 + $0x188] sm:$0xff]
                  %946 = vst [vmem:[%s846 + $0x188] sm:$0xff] %v945
                  %v947 = vld [vmem:[%s845 + $0x190] sm:$0xff]
                  %948 = vst [vmem:[%s846 + $0x190] sm:$0xff] %v947
                  %v949 = vld [vmem:[%s845 + $0x198] sm:$0xff]
                  %950 = vst [vmem:[%s846 + $0x198] sm:$0xff] %v949
                  %v951 = vld [vmem:[%s845 + $0x1a0] sm:$0xff]
                  %952 = vst [vmem:[%s846 + $0x1a0] sm:$0xff] %v951
                  %v953 = vld [vmem:[%s845 + $0x1a8] sm:$0xff]
                  %954 = vst [vmem:[%s846 + $0x1a8] sm:$0xff] %v953
                  %v955 = vld [vmem:[%s845 + $0x1b0] sm:$0xff]
                  %956 = vst [vmem:[%s846 + $0x1b0] sm:$0xff] %v955
                  %v957 = vld [vmem:[%s845 + $0x1b8] sm:$0xff]
                  %958 = vst [vmem:[%s846 + $0x1b8] sm:$0xff] %v957
                  %v959 = vld [vmem:[%s845 + $0x1c0] sm:$0xff]
                  %960 = vst [vmem:[%s846 + $0x1c0] sm:$0xff] %v959
                  %v961 = vld [vmem:[%s845 + $0x1c8] sm:$0xff]
                  %962 = vst [vmem:[%s846 + $0x1c8] sm:$0xff] %v961
                  %v963 = vld [vmem:[%s845 + $0x1d0] sm:$0xff]
                  %964 = vst [vmem:[%s846 + $0x1d0] sm:$0xff] %v963
                  %v965 = vld [vmem:[%s845 + $0x1d8] sm:$0xff]
                  %966 = vst [vmem:[%s846 + $0x1d8] sm:$0xff] %v965
                  %v967 = vld [vmem:[%s845 + $0x1e0] sm:$0xff]
                  %968 = vst [vmem:[%s846 + $0x1e0] sm:$0xff] %v967
                  %v969 = vld [vmem:[%s845 + $0x1e8] sm:$0xff]
                  %970 = vst [vmem:[%s846 + $0x1e8] sm:$0xff] %v969
                  %v971 = vld [vmem:[%s845 + $0x1f0] sm:$0xff]
                  %972 = vst [vmem:[%s846 + $0x1f0] sm:$0xff] %v971
                  %v973 = vld [vmem:[%s845 + $0x1f8] sm:$0xff]
                  %974 = vst [vmem:[%s846 + $0x1f8] sm:$0xff] %v973
                  %s975 = sadd.s32 1, %s844
                  %p976 = scmp.ge.s32.totalorder %s975, %s835
                  %s977 = scalar_select %p976, 0, %s975
                  %s978 = smul.u32 %s977, 512
                  %s979 = smul.u32 %s977, 512
                  %s980 = scalar_lea.vmem %s797, %s978 [#allocation4]
                  %s981 = scalar_lea.vmem %s807, %s979
                $region130: #{conv_autoencoder_forward.13} parent=124 // loop_footer
                  %s841 = sadd.s32 %s839, 1
                $region131: #{conv_autoencoder_forward.13} parent=124 // loop_footer_branch
                  %838 = sbr.rel target = $region127
                $region132: #{conv_autoencoder_forward.13} parent=124 // loop_exit
                  _
                %s982 = sshrl.u32 %s834, 6
                %s983 = sand.u32 %s834, 63
                %s984 = smul.u32 %s982, 64
                %s985 = smul.u32 128, %s984
                %s986 = sshra.s32 %s985, 4
                %s987 = scalar_lea.vmem %s797, %s986 [#allocation4]
                %s988 = smul.u32 128, %s984
                %s989 = sshra.s32 %s988, 4
                %s990 = scalar_lea.vmem %s807, %s989
                // While loop
                $region133: #{conv_autoencoder_forward.13} parent=124 // loop_pre_header
                  _
                $region134: #{conv_autoencoder_forward.13} parent=124 // loop_header
                  %s994 = sphi 0, %s996
                  %p995 = scmp.ge.s32.totalorder %s994, %s983
                  %s999 = sphi 0, %s1006
                  %s1000 = sphi %s987, %s1009
                  %s1001 = sphi %s990, %s1010
                $region135: #{conv_autoencoder_forward.13} parent=124 // loop_header_branch
                  %998 = sbr.rel (%p995) target = $region139
                $region136: #{conv_autoencoder_forward.13} parent=124 // loop_body
                  %v1002 = vld [vmem:[%s1000] sm:$0xff]
                  %1003 = vst [vmem:[%s1001] sm:$0xff] %v1002
                  %s1004 = sadd.s32 1, %s999
                  %p1005 = scmp.ge.s32.totalorder %s1004, %s983
                  %s1006 = scalar_select %p1005, 0, %s1004
                  %s1007 = smul.u32 %s1006, 8
                  %s1008 = smul.u32 %s1006, 8
                  %s1009 = scalar_lea.vmem %s987, %s1007 [#allocation4]
                  %s1010 = scalar_lea.vmem %s990, %s1008
                $region137: #{conv_autoencoder_forward.13} parent=124 // loop_footer
                  %s996 = sadd.s32 %s994, 1
                $region138: #{conv_autoencoder_forward.13} parent=124 // loop_footer_branch
                  %993 = sbr.rel target = $region134
                $region139: #{conv_autoencoder_forward.13} parent=124 // loop_exit
                  _
              $region125: #{conv_autoencoder_forward.13} parent=109 // pred_fallthru
                _
              %p1011 = pneg %p830
              // Predicated region
              $region140: #{conv_autoencoder_forward.13} parent=109 // pred_check
                _
              $region141: #{conv_autoencoder_forward.13} parent=109 // pred_check_branch
                %1013 = sbr.rel (%p830) target = $region143
              $region142: #{conv_autoencoder_forward.13} parent=109 // pred_region
                %s1014 = sand.u32 %s804, 7
                %s1015 = ssub.s32 %s804, %s1014
                %s1016 = scalar_lea.vmem %s797, %s1015 [#allocation4]
                %s1017 = ssub.s32 %s804, %s1014
                %s1018 = scalar_lea.vmem %s807, %s1017
                %s1019 = sshrl.u32 %s804, 3
                %s1020 = sshrl.u32 %s1019, 6
                // While loop
                $region144: #{conv_autoencoder_forward.13} parent=142 // loop_pre_header
                  _
                $region145: #{conv_autoencoder_forward.13} parent=142 // loop_header
                  %s1024 = sphi 0, %s1026
                  %p1025 = scmp.ge.s32.totalorder %s1024, %s1020
                  %s1029 = sphi 0, %s1162
                  %s1030 = sphi %s797, %s1165
                  %s1031 = sphi %s807, %s1166
                $region146: #{conv_autoencoder_forward.13} parent=142 // loop_header_branch
                  %1028 = sbr.rel (%p1025) target = $region150
                $region147: #{conv_autoencoder_forward.13} parent=142 // loop_body
                  %v1032 = vld [vmem:[%s1030] sm:$0xff]
                  %1033 = vst [vmem:[%s1031] sm:$0xff] %v1032
                  %v1034 = vld [vmem:[%s1030 + $0x8] sm:$0xff]
                  %1035 = vst [vmem:[%s1031 + $0x8] sm:$0xff] %v1034
                  %v1036 = vld [vmem:[%s1030 + $0x10] sm:$0xff]
                  %1037 = vst [vmem:[%s1031 + $0x10] sm:$0xff] %v1036
                  %v1038 = vld [vmem:[%s1030 + $0x18] sm:$0xff]
                  %1039 = vst [vmem:[%s1031 + $0x18] sm:$0xff] %v1038
                  %v1040 = vld [vmem:[%s1030 + $0x20] sm:$0xff]
                  %1041 = vst [vmem:[%s1031 + $0x20] sm:$0xff] %v1040
                  %v1042 = vld [vmem:[%s1030 + $0x28] sm:$0xff]
                  %1043 = vst [vmem:[%s1031 + $0x28] sm:$0xff] %v1042
                  %v1044 = vld [vmem:[%s1030 + $0x30] sm:$0xff]
                  %1045 = vst [vmem:[%s1031 + $0x30] sm:$0xff] %v1044
                  %v1046 = vld [vmem:[%s1030 + $0x38] sm:$0xff]
                  %1047 = vst [vmem:[%s1031 + $0x38] sm:$0xff] %v1046
                  %v1048 = vld [vmem:[%s1030 + $0x40] sm:$0xff]
                  %1049 = vst [vmem:[%s1031 + $0x40] sm:$0xff] %v1048
                  %v1050 = vld [vmem:[%s1030 + $0x48] sm:$0xff]
                  %1051 = vst [vmem:[%s1031 + $0x48] sm:$0xff] %v1050
                  %v1052 = vld [vmem:[%s1030 + $0x50] sm:$0xff]
                  %1053 = vst [vmem:[%s1031 + $0x50] sm:$0xff] %v1052
                  %v1054 = vld [vmem:[%s1030 + $0x58] sm:$0xff]
                  %1055 = vst [vmem:[%s1031 + $0x58] sm:$0xff] %v1054
                  %v1056 = vld [vmem:[%s1030 + $0x60] sm:$0xff]
                  %1057 = vst [vmem:[%s1031 + $0x60] sm:$0xff] %v1056
                  %v1058 = vld [vmem:[%s1030 + $0x68] sm:$0xff]
                  %1059 = vst [vmem:[%s1031 + $0x68] sm:$0xff] %v1058
                  %v1060 = vld [vmem:[%s1030 + $0x70] sm:$0xff]
                  %1061 = vst [vmem:[%s1031 + $0x70] sm:$0xff] %v1060
                  %v1062 = vld [vmem:[%s1030 + $0x78] sm:$0xff]
                  %1063 = vst [vmem:[%s1031 + $0x78] sm:$0xff] %v1062
                  %v1064 = vld [vmem:[%s1030 + $0x80] sm:$0xff]
                  %1065 = vst [vmem:[%s1031 + $0x80] sm:$0xff] %v1064
                  %v1066 = vld [vmem:[%s1030 + $0x88] sm:$0xff]
                  %1067 = vst [vmem:[%s1031 + $0x88] sm:$0xff] %v1066
                  %v1068 = vld [vmem:[%s1030 + $0x90] sm:$0xff]
                  %1069 = vst [vmem:[%s1031 + $0x90] sm:$0xff] %v1068
                  %v1070 = vld [vmem:[%s1030 + $0x98] sm:$0xff]
                  %1071 = vst [vmem:[%s1031 + $0x98] sm:$0xff] %v1070
                  %v1072 = vld [vmem:[%s1030 + $0xa0] sm:$0xff]
                  %1073 = vst [vmem:[%s1031 + $0xa0] sm:$0xff] %v1072
                  %v1074 = vld [vmem:[%s1030 + $0xa8] sm:$0xff]
                  %1075 = vst [vmem:[%s1031 + $0xa8] sm:$0xff] %v1074
                  %v1076 = vld [vmem:[%s1030 + $0xb0] sm:$0xff]
                  %1077 = vst [vmem:[%s1031 + $0xb0] sm:$0xff] %v1076
                  %v1078 = vld [vmem:[%s1030 + $0xb8] sm:$0xff]
                  %1079 = vst [vmem:[%s1031 + $0xb8] sm:$0xff] %v1078
                  %v1080 = vld [vmem:[%s1030 + $0xc0] sm:$0xff]
                  %1081 = vst [vmem:[%s1031 + $0xc0] sm:$0xff] %v1080
                  %v1082 = vld [vmem:[%s1030 + $0xc8] sm:$0xff]
                  %1083 = vst [vmem:[%s1031 + $0xc8] sm:$0xff] %v1082
                  %v1084 = vld [vmem:[%s1030 + $0xd0] sm:$0xff]
                  %1085 = vst [vmem:[%s1031 + $0xd0] sm:$0xff] %v1084
                  %v1086 = vld [vmem:[%s1030 + $0xd8] sm:$0xff]
                  %1087 = vst [vmem:[%s1031 + $0xd8] sm:$0xff] %v1086
                  %v1088 = vld [vmem:[%s1030 + $0xe0] sm:$0xff]
                  %1089 = vst [vmem:[%s1031 + $0xe0] sm:$0xff] %v1088
                  %v1090 = vld [vmem:[%s1030 + $0xe8] sm:$0xff]
                  %1091 = vst [vmem:[%s1031 + $0xe8] sm:$0xff] %v1090
                  %v1092 = vld [vmem:[%s1030 + $0xf0] sm:$0xff]
                  %1093 = vst [vmem:[%s1031 + $0xf0] sm:$0xff] %v1092
                  %v1094 = vld [vmem:[%s1030 + $0xf8] sm:$0xff]
                  %1095 = vst [vmem:[%s1031 + $0xf8] sm:$0xff] %v1094
                  %v1096 = vld [vmem:[%s1030 + $0x100] sm:$0xff]
                  %1097 = vst [vmem:[%s1031 + $0x100] sm:$0xff] %v1096
                  %v1098 = vld [vmem:[%s1030 + $0x108] sm:$0xff]
                  %1099 = vst [vmem:[%s1031 + $0x108] sm:$0xff] %v1098
                  %v1100 = vld [vmem:[%s1030 + $0x110] sm:$0xff]
                  %1101 = vst [vmem:[%s1031 + $0x110] sm:$0xff] %v1100
                  %v1102 = vld [vmem:[%s1030 + $0x118] sm:$0xff]
                  %1103 = vst [vmem:[%s1031 + $0x118] sm:$0xff] %v1102
                  %v1104 = vld [vmem:[%s1030 + $0x120] sm:$0xff]
                  %1105 = vst [vmem:[%s1031 + $0x120] sm:$0xff] %v1104
                  %v1106 = vld [vmem:[%s1030 + $0x128] sm:$0xff]
                  %1107 = vst [vmem:[%s1031 + $0x128] sm:$0xff] %v1106
                  %v1108 = vld [vmem:[%s1030 + $0x130] sm:$0xff]
                  %1109 = vst [vmem:[%s1031 + $0x130] sm:$0xff] %v1108
                  %v1110 = vld [vmem:[%s1030 + $0x138] sm:$0xff]
                  %1111 = vst [vmem:[%s1031 + $0x138] sm:$0xff] %v1110
                  %v1112 = vld [vmem:[%s1030 + $0x140] sm:$0xff]
                  %1113 = vst [vmem:[%s1031 + $0x140] sm:$0xff] %v1112
                  %v1114 = vld [vmem:[%s1030 + $0x148] sm:$0xff]
                  %1115 = vst [vmem:[%s1031 + $0x148] sm:$0xff] %v1114
                  %v1116 = vld [vmem:[%s1030 + $0x150] sm:$0xff]
                  %1117 = vst [vmem:[%s1031 + $0x150] sm:$0xff] %v1116
                  %v1118 = vld [vmem:[%s1030 + $0x158] sm:$0xff]
                  %1119 = vst [vmem:[%s1031 + $0x158] sm:$0xff] %v1118
                  %v1120 = vld [vmem:[%s1030 + $0x160] sm:$0xff]
                  %1121 = vst [vmem:[%s1031 + $0x160] sm:$0xff] %v1120
                  %v1122 = vld [vmem:[%s1030 + $0x168] sm:$0xff]
                  %1123 = vst [vmem:[%s1031 + $0x168] sm:$0xff] %v1122
                  %v1124 = vld [vmem:[%s1030 + $0x170] sm:$0xff]
                  %1125 = vst [vmem:[%s1031 + $0x170] sm:$0xff] %v1124
                  %v1126 = vld [vmem:[%s1030 + $0x178] sm:$0xff]
                  %1127 = vst [vmem:[%s1031 + $0x178] sm:$0xff] %v1126
                  %v1128 = vld [vmem:[%s1030 + $0x180] sm:$0xff]
                  %1129 = vst [vmem:[%s1031 + $0x180] sm:$0xff] %v1128
                  %v1130 = vld [vmem:[%s1030 + $0x188] sm:$0xff]
                  %1131 = vst [vmem:[%s1031 + $0x188] sm:$0xff] %v1130
                  %v1132 = vld [vmem:[%s1030 + $0x190] sm:$0xff]
                  %1133 = vst [vmem:[%s1031 + $0x190] sm:$0xff] %v1132
                  %v1134 = vld [vmem:[%s1030 + $0x198] sm:$0xff]
                  %1135 = vst [vmem:[%s1031 + $0x198] sm:$0xff] %v1134
                  %v1136 = vld [vmem:[%s1030 + $0x1a0] sm:$0xff]
                  %1137 = vst [vmem:[%s1031 + $0x1a0] sm:$0xff] %v1136
                  %v1138 = vld [vmem:[%s1030 + $0x1a8] sm:$0xff]
                  %1139 = vst [vmem:[%s1031 + $0x1a8] sm:$0xff] %v1138
                  %v1140 = vld [vmem:[%s1030 + $0x1b0] sm:$0xff]
                  %1141 = vst [vmem:[%s1031 + $0x1b0] sm:$0xff] %v1140
                  %v1142 = vld [vmem:[%s1030 + $0x1b8] sm:$0xff]
                  %1143 = vst [vmem:[%s1031 + $0x1b8] sm:$0xff] %v1142
                  %v1144 = vld [vmem:[%s1030 + $0x1c0] sm:$0xff]
                  %1145 = vst [vmem:[%s1031 + $0x1c0] sm:$0xff] %v1144
                  %v1146 = vld [vmem:[%s1030 + $0x1c8] sm:$0xff]
                  %1147 = vst [vmem:[%s1031 + $0x1c8] sm:$0xff] %v1146
                  %v1148 = vld [vmem:[%s1030 + $0x1d0] sm:$0xff]
                  %1149 = vst [vmem:[%s1031 + $0x1d0] sm:$0xff] %v1148
                  %v1150 = vld [vmem:[%s1030 + $0x1d8] sm:$0xff]
                  %1151 = vst [vmem:[%s1031 + $0x1d8] sm:$0xff] %v1150
                  %v1152 = vld [vmem:[%s1030 + $0x1e0] sm:$0xff]
                  %1153 = vst [vmem:[%s1031 + $0x1e0] sm:$0xff] %v1152
                  %v1154 = vld [vmem:[%s1030 + $0x1e8] sm:$0xff]
                  %1155 = vst [vmem:[%s1031 + $0x1e8] sm:$0xff] %v1154
                  %v1156 = vld [vmem:[%s1030 + $0x1f0] sm:$0xff]
                  %1157 = vst [vmem:[%s1031 + $0x1f0] sm:$0xff] %v1156
                  %v1158 = vld [vmem:[%s1030 + $0x1f8] sm:$0xff]
                  %1159 = vst [vmem:[%s1031 + $0x1f8] sm:$0xff] %v1158
                  %s1160 = sadd.s32 1, %s1029
                  %p1161 = scmp.ge.s32.totalorder %s1160, %s1020
                  %s1162 = scalar_select %p1161, 0, %s1160
                  %s1163 = smul.u32 %s1162, 512
                  %s1164 = smul.u32 %s1162, 512
                  %s1165 = scalar_lea.vmem %s797, %s1163 [#allocation4]
                  %s1166 = scalar_lea.vmem %s807, %s1164
                $region148: #{conv_autoencoder_forward.13} parent=142 // loop_footer
                  %s1026 = sadd.s32 %s1024, 1
                $region149: #{conv_autoencoder_forward.13} parent=142 // loop_footer_branch
                  %1023 = sbr.rel target = $region145
                $region150: #{conv_autoencoder_forward.13} parent=142 // loop_exit
                  _
                %s1167 = sshrl.u32 %s1019, 6
                %s1168 = sand.u32 %s1019, 63
                %s1169 = smul.u32 %s1167, 64
                %s1170 = smul.u32 128, %s1169
                %s1171 = sshra.s32 %s1170, 4
                %s1172 = scalar_lea.vmem %s797, %s1171 [#allocation4]
                %s1173 = smul.u32 128, %s1169
                %s1174 = sshra.s32 %s1173, 4
                %s1175 = scalar_lea.vmem %s807, %s1174
                // While loop
                $region151: #{conv_autoencoder_forward.13} parent=142 // loop_pre_header
                  _
                $region152: #{conv_autoencoder_forward.13} parent=142 // loop_header
                  %s1179 = sphi 0, %s1181
                  %p1180 = scmp.ge.s32.totalorder %s1179, %s1168
                  %s1184 = sphi 0, %s1191
                  %s1185 = sphi %s1172, %s1194
                  %s1186 = sphi %s1175, %s1195
                $region153: #{conv_autoencoder_forward.13} parent=142 // loop_header_branch
                  %1183 = sbr.rel (%p1180) target = $region157
                $region154: #{conv_autoencoder_forward.13} parent=142 // loop_body
                  %v1187 = vld [vmem:[%s1185] sm:$0xff]
                  %1188 = vst [vmem:[%s1186] sm:$0xff] %v1187
                  %s1189 = sadd.s32 1, %s1184
                  %p1190 = scmp.ge.s32.totalorder %s1189, %s1168
                  %s1191 = scalar_select %p1190, 0, %s1189
                  %s1192 = smul.u32 %s1191, 8
                  %s1193 = smul.u32 %s1191, 8
                  %s1194 = scalar_lea.vmem %s1172, %s1192 [#allocation4]
                  %s1195 = scalar_lea.vmem %s1175, %s1193
                $region155: #{conv_autoencoder_forward.13} parent=142 // loop_footer
                  %s1181 = sadd.s32 %s1179, 1
                $region156: #{conv_autoencoder_forward.13} parent=142 // loop_footer_branch
                  %1178 = sbr.rel target = $region152
                $region157: #{conv_autoencoder_forward.13} parent=142 // loop_exit
                  _
                %s1196 = sshllo.u32 0, %s1014
                loop: start=0, step=1, limit=1
                $region158: #{conv_autoencoder_forward.13} parent=142 // loop_pre_header
                  _
                $region159: #{conv_autoencoder_forward.13} parent=142 // loop_header
                  %s1198 = sphi 0, %s1202
                  %p1199 = scmp.ge.s32.totalorder %s1198, 1
                  %s1203 = sphi %s1016, %s1016
                  %s1204 = sphi %s1018, %s1018
                $region160: #{conv_autoencoder_forward.13} parent=142 // loop_header_branch
                  %1201 = sbr.rel (%p1199) target = $region164
                $region161: #{conv_autoencoder_forward.13} parent=142 // loop_body
                  %v1205 = vld [vmem:[%s1203] sm:%s1196]
                  %1206 = vst [vmem:[%s1204] sm:%s1196] %v1205
                $region162: #{conv_autoencoder_forward.13} parent=142 // loop_footer
                  %s1202 = sadd.s32 1, %s1198
                $region163: #{conv_autoencoder_forward.13} parent=142 // loop_footer_branch
                  %1197 = sbr.rel target = $region159
                $region164: #{conv_autoencoder_forward.13} parent=142 // loop_exit
                  _
              $region143: #{conv_autoencoder_forward.13} parent=109 // pred_fallthru
                _
            $region110: #{conv_autoencoder_forward.13} parent=105 // pred_fallthru
              _
            // Predicated region
            $region111: #{conv_autoencoder_forward.13} parent=105 // pred_check
              %p815 = pneg %p811
            $region112: #{conv_autoencoder_forward.13} parent=105 // pred_check_branch
              %817 = sbr.rel (%p815) target = $region114
            $region113: #{conv_autoencoder_forward.13} parent=105 // pred_region
              %s818 = sshllo.u32 0, %s804
              loop: start=0, step=1, limit=1
              $region115: #{conv_autoencoder_forward.13} parent=113 // loop_pre_header
                _
              $region116: #{conv_autoencoder_forward.13} parent=113 // loop_header
                %s820 = sphi 0, %s824
                %p821 = scmp.ge.s32.totalorder %s820, 1
                %s825 = sphi %s797, %s797
                %s826 = sphi %s807, %s807
              $region117: #{conv_autoencoder_forward.13} parent=113 // loop_header_branch
                %823 = sbr.rel (%p821) target = $region121
              $region118: #{conv_autoencoder_forward.13} parent=113 // loop_body
                %v827 = vld [vmem:[%s825] sm:%s818]
                %828 = vst [vmem:[%s826] sm:%s818] %v827
              $region119: #{conv_autoencoder_forward.13} parent=113 // loop_footer
                %s824 = sadd.s32 1, %s820
              $region120: #{conv_autoencoder_forward.13} parent=113 // loop_footer_branch
                %819 = sbr.rel target = $region116
              $region121: #{conv_autoencoder_forward.13} parent=113 // loop_exit
                _
            $region114: #{conv_autoencoder_forward.13} parent=105 // pred_fallthru
              _
          $region106: #{conv_autoencoder_forward.13} parent=101 // pred_fallthru
            _
          %1207 = vnop
        $region102: #{conv_autoencoder_forward.13} parent=93 // pred_fallthru
          _
      $region94: #{conv_autoencoder_forward.13} parent=5 // pred_fallthru
        _
      %p1208 = scmp.le.s32.totalorder 2, %s11
      // Predicated region
      $region165: #{conv_autoencoder_forward.13} parent=5 // pred_check
        %p1209 = pneg %p1208
      $region166: #{conv_autoencoder_forward.13} parent=5 // pred_check_branch
        %1211 = sbr.rel (%p1209) target = $region168
      $region167: #{conv_autoencoder_forward.13} parent=5 // pred_region
        %s1212 = ssub.s32 %s11, 2
        // Predicated region
        $region169: #{conv_autoencoder_forward.13} parent=167 // pred_check
          %p1213 = pneg %p108
        $region170: #{conv_autoencoder_forward.13} parent=167 // pred_check_branch
          %1215 = sbr.rel (%p1213) target = $region172
        $region171: #{conv_autoencoder_forward.13} parent=167 // pred_region
          %s1216 = sand.u32 %s93, 1
          %s1217 = sand.u32 %s93, 1
          %s1218 = smul.addr %s1217, 4
          %s1219 = scalar_lea.vmem [#allocation4], %s1218
        $region172: #{conv_autoencoder_forward.13} parent=167 // pred_fallthru
          _
      $region168: #{conv_autoencoder_forward.13} parent=5 // pred_fallthru
        _
    $region6: #{conv_autoencoder_forward.13} parent=1 // loop_footer
      %s15 = sadd.s32 1, %s11
    $region7: #{conv_autoencoder_forward.13} parent=1 // loop_footer_branch
      %10 = sbr.rel target = $region3
    $region8: #{conv_autoencoder_forward.13} parent=1 // loop_exit
      _

</llo_original>
